<compile_context>
chip_gen: v5e
topology: v5e:2x2
jax: 0.10.0
libtpu: 0.0.40
codegen_flags: <defaults>
</compile_context>

<pallas_src>
import jax
import jax.numpy as jnp
from jax.experimental import pallas as pl
from jax.experimental.pallas import tpu as pltpu


def _round_up(x, m):
    return ((x + m - 1) // m) * m


def _resnet_kernel(x_ref, w_in_ref, w_blk_ref, w_out_ref, bias_ref, out_ref):
    """One batch tile of the full forward pass; weights are VMEM-resident.

    Shapes (all static, lane-padded):
      x_ref    : [TILE_B, IN_pad]       bf16   (q | p | z, zero-padded)
      w_in_ref : [IN_pad, H_pad]        bf16
      w_blk_ref: [NB, H_pad, 3*H_pad]   bf16   ([W_res | W_1 | W_2] per block)
      w_out_ref: [H_pad, OUT_pad]       bf16
      bias_ref : [2 + 2*NB, BW]         f32    (packed biases, zero-padded)
      out_ref  : [TILE_B, OUT_pad]      out dtype

    Invariant: padded lanes/rows of every weight and bias are exactly zero, so
    padded feature lanes stay zero through the whole net (ReLU preserves 0).
    """
    f32 = jnp.float32
    bf16 = jnp.bfloat16

    nb = w_blk_ref.shape[0]
    h_pad = w_out_ref.shape[0]
    out_pad = w_out_ref.shape[1]

    # fc_in: one fused MXU pass over the concatenated [q|p|z] input.
    h = (jnp.dot(x_ref[...], w_in_ref[...], preferred_element_type=f32)
         + bias_ref[0:1, :h_pad])

    # Residual blocks (static unroll; nb is a Python int).
    # NOTE(perf, v6e/v7x): this elementwise chain could run in bf16 on chips
    # with bf16 VALUs; it is kept in f32 so the same kernel is correct and
    # optimal on v5e (no bf16 VPU).
    for i in range(nb):
        w_cat = w_blk_ref[i, :, :2 * h_pad]        # [H_pad, 2*H_pad] = [W_res | W_1]
        w2 = w_blk_ref[i, :, 2 * h_pad:]           # [H_pad, H_pad]
        b_cat = bias_ref[1 + 2 * i:2 + 2 * i, :2 * h_pad]
        b2 = bias_ref[2 + 2 * i:3 + 2 * i, :h_pad]

        rt = jnp.dot(h.astype(bf16), w_cat, preferred_element_type=f32) + b_cat
        residual = rt[:, :h_pad]                   # linear_residual(h)
        t = jnp.maximum(rt[:, h_pad:], 0.0)        # relu(linear1(h))
        t = jnp.maximum(jnp.dot(t.astype(bf16), w2,
                                preferred_element_type=f32) + b2, 0.0)
        h = jnp.maximum(t + residual, 0.0)         # block output + outer ReLU

    # fc_out (lane-dense OUT_pad-wide store; padded lanes sliced off in wrapper)
    out = (jnp.dot(h.astype(bf16), w_out_ref[...], preferred_element_type=f32)
           + bias_ref[1 + 2 * nb:2 + 2 * nb, :out_pad])
    out_ref[...] = out.astype(out_ref.dtype)


def simple_resnet_forward(q, p, z, params, *, q_dim, num_res_blocks,
                          tile_b=512, weight_dtype=jnp.bfloat16,
                          act_dtype=jnp.bfloat16, out_dtype=jnp.float32):
    """params: dict with fc_in / blocks(list) / fc_out, each entry (W[in,out], b[out]).

    out_dtype=jnp.bfloat16 halves the dominant output store (useful on v6e);
    default f32 preserves the module's exact output dtype.
    """
    assert num_res_blocks >= 1 and len(params["blocks"]) == num_res_blocks

    B = q.shape[0]
    w_in, b_in = params["fc_in"]
    w_out, b_out = params["fc_out"]
    input_dim, H = w_in.shape
    output_dim = w_out.shape[1]
    assert q.shape[1] + p.shape[1] + z.shape[1] == input_dim

    LANE = 128
    H_pad = _round_up(H, LANE)
    OUT_pad = _round_up(output_dim, LANE)
    IN_pad = _round_up(input_dim, 8)               # sublane-friendly weight rows
    BW = max(2 * H_pad, OUT_pad)                   # packed-bias row width
    n_bias_rows = 2 + 2 * num_res_blocks

    # --- batch tiling: large tiles to amortize per-step overhead, but >= 2
    #     grid steps whenever B allows it (pipeline overlap + v7x megacore). ---
    B8 = _round_up(B, 8)
    tile_b = max(8, min(_round_up(tile_b, 8), B8))
    if B8 >= 16 and B8 // tile_b < 2:
        tile_b = _round_up((B8 + 1) // 2, 8)
    B_pad = _round_up(B, tile_b)
    grid = (B_pad // tile_b,)

    f32 = jnp.float32

    def pad2(a, r, c):
        return jnp.pad(a, ((0, r - a.shape[0]), (0, c - a.shape[1])))

    def pad_bias(b):
        return jnp.pad(b, (0, BW - b.shape[0]))

    # ---- pack parameters (weights already [in, out]) ----
    # Zero padding keeps padded lanes exactly 0 through the net (zero weights
    # + zero biases + ReLU). Do NOT pad biases with non-zero values.
    w_in_p = pad2(w_in, IN_pad, H_pad).astype(weight_dtype)

    blk_ws = []
    bias_rows = [pad_bias(b_in)]
    for blk in params["blocks"]:
        wr, br = blk["linear_residual"]
        w1, b1 = blk["linear1"]
        w2, b2 = blk["linear2"]
        blk_ws.append(jnp.concatenate(
            [pad2(wr, H_pad, H_pad), pad2(w1, H_pad, H_pad), pad2(w2, H_pad, H_pad)],
            axis=1))                               # [H_pad, 3*H_pad]
        bias_rows.append(pad_bias(jnp.concatenate(
            [jnp.pad(br, (0, H_pad - H)), jnp.pad(b1, (0, H_pad - H))])))
        bias_rows.append(pad_bias(b2))
    bias_rows.append(pad_bias(b_out))

    w_blk = jnp.stack(blk_ws, axis=0).astype(weight_dtype)   # [nb, H_pad, 3*H_pad]
    w_out_p = pad2(w_out, H_pad, OUT_pad).astype(weight_dtype)
    biases = jnp.stack(bias_rows, axis=0).astype(f32)         # [2+2*nb, BW]

    # ---- pack the activation: one [B_pad, IN_pad] bf16 slab (q | p | z) ----
    x = jnp.concatenate([q, p, z], axis=-1).astype(act_dtype)
    xf = jnp.pad(x, ((0, B_pad - B), (0, IN_pad - input_dim)))

    # ---- cost estimate (lets XLA schedule wrapper pads/concats around kernel)
    wsize = jnp.dtype(weight_dtype).itemsize
    weight_elems = (IN_pad * H_pad + num_res_blocks * 3 * H_pad * H_pad
                    + H_pad * OUT_pad)
    flops = 2 * B_pad * weight_elems
    bytes_accessed = (B_pad * IN_pad * jnp.dtype(act_dtype).itemsize
                      + B_pad * OUT_pad * jnp.dtype(out_dtype).itemsize
                      + weight_elems * wsize
                      + n_bias_rows * BW * 4)
    cost = pl.CostEstimate(flops=flops, transcendentals=0,
                           bytes_accessed=bytes_accessed)

    act_map = lambda i: (i, 0)

    def build_call(single_buffer_weights):
        # Weights/biases use constant index_maps (stay VMEM-resident across
        # grid steps); Buffered(1) removes their useless second pipeline buffer.
        if single_buffer_weights:
            wspec = lambda shape, imap: pl.BlockSpec(
                shape, imap, pipeline_mode=pl.Buffered(1))
        else:
            wspec = pl.BlockSpec
        in_specs = [
            pl.BlockSpec((tile_b, IN_pad), act_map),
            wspec((IN_pad, H_pad), lambda i: (0, 0)),
            wspec((num_res_blocks, H_pad, 3 * H_pad), lambda i: (0, 0, 0)),
            wspec((H_pad, OUT_pad), lambda i: (0, 0)),
            wspec((n_bias_rows, BW), lambda i: (0, 0)),
        ]
        out_spec = pl.BlockSpec((tile_b, OUT_pad), act_map)
        return pl.pallas_call(
            _resnet_kernel,
            out_shape=jax.ShapeDtypeStruct((B_pad, OUT_pad), out_dtype),
            grid=grid,
            in_specs=in_specs,
            out_specs=out_spec,
            compiler_params=pltpu.CompilerParams(
                # batch axis is embarrassingly parallel -> megacore sharding
                dimension_semantics=("parallel",),
                # v5e scoped default is 16 MiB; 64 MiB == v7x physical VMEM.
                vmem_limit_bytes=64 * 1024 * 1024),
            cost_estimate=cost,
        )

    args = (xf, w_in_p, w_blk, w_out_p, biases)
    try:
        out = build_call(True)(*args)
    except Exception:
        # pipeline_mode=pl.Buffered(1) not supported by this jax/libtpu combo:
        # fall back to default double-buffered weights (same results, a bit
        # more VMEM).
        out = build_call(False)(*args)

    out = out[:B, :output_dim]
    return out[:, :q_dim], out[:, q_dim:]


def _init_linear(key, in_dim, out_dim):
    """Deterministic init mimicking nn.Linear default (uniform +-1/sqrt(in))."""
    kw, kb = jax.random.split(key)
    bound = 1.0 / jnp.sqrt(jnp.float32(in_dim))
    w = jax.random.uniform(kw, (in_dim, out_dim), jnp.float32, -bound, bound)
    b = jax.random.uniform(kb, (out_dim,), jnp.float32, -bound, bound)
    return w, b


def init_params(key, *, q_dim, z_dim, hidden_dim, output_dim, num_res_blocks):
    input_dim = q_dim * 2 + z_dim
    keys = jax.random.split(key, 2 + 3 * num_res_blocks)
    params = {"fc_in": _init_linear(keys[0], input_dim, hidden_dim), "blocks": []}
    k_idx = 1
    for _ in range(num_res_blocks):
        blk = {
            "linear_residual": _init_linear(keys[k_idx], hidden_dim, hidden_dim),
            "linear1": _init_linear(keys[k_idx + 1], hidden_dim, hidden_dim),
            "linear2": _init_linear(keys[k_idx + 2], hidden_dim, hidden_dim),
        }
        k_idx += 3
        params["blocks"].append(blk)
    params["fc_out"] = _init_linear(keys[k_idx], hidden_dim, output_dim)
    return params


def _reference_forward(q, p, z, params, *, q_dim, num_res_blocks,
                       weight_dtype=jnp.bfloat16):
    """Pure-JAX reference using the same numerics policy as the kernel
    (bf16 matmul inputs, f32 accumulation, f32 elementwise)."""
    def lin(x, wb):
        w, b = wb
        return jnp.dot(x.astype(weight_dtype), w.astype(weight_dtype),
                       preferred_element_type=jnp.float32) + b

    x = jnp.concatenate([q, p, z], axis=-1)
    h = lin(x, params["fc_in"])
    for i in range(num_res_blocks):
        blk = params["blocks"][i]
        residual = lin(h, blk["linear_residual"])
        t = jnp.maximum(lin(h, blk["linear1"]), 0.0)
        t = jnp.maximum(lin(t, blk["linear2"]), 0.0)
        h = jnp.maximum(t + residual, 0.0)
    out = lin(h, params["fc_out"])
    return out[:, :q_dim], out[:, q_dim:]


if __name__ == "__main__":
    # Small config consistent with the module's forward.
    q_dim = 8
    z_dim = 16
    hidden_dim = 32
    output_dim = 16          # split into q (q_dim) and p (output_dim - q_dim)
    num_res_blocks = 2
    batch = 8

    key = jax.random.PRNGKey(0)
    kq, kp, kz, kparams = jax.random.split(key, 4)

    q = jax.random.normal(kq, (batch, q_dim), jnp.float32)
    p = jax.random.normal(kp, (batch, q_dim), jnp.float32)
    z = jax.random.normal(kz, (batch, z_dim), jnp.float32)

    params = init_params(kparams, q_dim=q_dim, z_dim=z_dim, hidden_dim=hidden_dim,
                         output_dim=output_dim, num_res_blocks=num_res_blocks)

    q_out, p_out = simple_resnet_forward(q, p, z, params, q_dim=q_dim,
                                         num_res_blocks=num_res_blocks)
    jax.block_until_ready((q_out, p_out))

    # sanity check against the pure-JAX reference (same bf16-weight numerics)
    q_ref, p_ref = _reference_forward(q, p, z, params, q_dim=q_dim,
                                      num_res_blocks=num_res_blocks)
    assert q_out.shape == (batch, q_dim) and p_out.shape == (batch, output_dim - q_dim)
    assert jnp.allclose(q_out, q_ref, atol=2e-2, rtol=2e-2), "q mismatch (small batch)"
    assert jnp.allclose(p_out, p_ref, atol=2e-2, rtol=2e-2), "p mismatch (small batch)"

    # Second check: a batch that exercises multi-step grid, batch padding and
    # the >=2-grid-steps clamp (tile_b forced to ~B/2 here).
    batch2 = 600
    kq2, kp2, kz2 = jax.random.split(jax.random.PRNGKey(1), 3)
    q2 = jax.random.normal(kq2, (batch2, q_dim), jnp.float32)
    p2 = jax.random.normal(kp2, (batch2, q_dim), jnp.float32)
    z2 = jax.random.normal(kz2, (batch2, z_dim), jnp.float32)
    q2_out, p2_out = simple_resnet_forward(q2, p2, z2, params, q_dim=q_dim,
                                           num_res_blocks=num_res_blocks)
    jax.block_until_ready((q2_out, p2_out))
    q2_ref, p2_ref = _reference_forward(q2, p2, z2, params, q_dim=q_dim,
                                        num_res_blocks=num_res_blocks)
    assert q2_out.shape == (batch2, q_dim)
    assert jnp.allclose(q2_out, q2_ref, atol=2e-2, rtol=2e-2), "q mismatch (tiled batch)"
    assert jnp.allclose(p2_out, p2_ref, atol=2e-2, rtol=2e-2), "p mismatch (tiled batch)"

    print("KERNEL_OK")
</pallas_src>

<mosaic_0001>
module attributes {stable_mosaic.version = 11 : i64} {
  func.func @_resnet_kernel(%arg0: i32, %arg1: memref<8x32xbf16, #tpu.memory_space<vmem>>, %arg2: memref<32x128xbf16, #tpu.memory_space<vmem>>, %arg3: memref<2x128x384xbf16, #tpu.memory_space<vmem>>, %arg4: memref<128x128xbf16, #tpu.memory_space<vmem>>, %arg5: memref<6x256xf32, #tpu.memory_space<vmem>>, %arg6: memref<8x128xf32, #tpu.memory_space<vmem>>) attributes {dimension_semantics = [#tpu.dimension_semantics<parallel>], iteration_bounds = array<i64: 1>, scalar_prefetch = 0 : i64, scratch_operands = 0 : i64, tpu.core_type = #tpu.core_type<tc>, window_params = [{transform_indices = @transform_0, window_bounds = array<i64: 8, 32>}, {pipeline_mode = #tpu.pipeline_mode<synchronous>, transform_indices = @transform_1, window_bounds = array<i64: 32, 128>}, {pipeline_mode = #tpu.pipeline_mode<synchronous>, transform_indices = @transform_2, window_bounds = array<i64: 2, 128, 384>}, {pipeline_mode = #tpu.pipeline_mode<synchronous>, transform_indices = @transform_3, window_bounds = array<i64: 128, 128>}, {pipeline_mode = #tpu.pipeline_mode<synchronous>, transform_indices = @transform_4, window_bounds = array<i64: 6, 256>}, {transform_indices = @transform_5, window_bounds = array<i64: 8, 128>}]} {
    %c0 = arith.constant 0 : index
    %c0_0 = arith.constant 0 : index
    %0 = vector.load %arg1[%c0, %c0_0] : memref<8x32xbf16, #tpu.memory_space<vmem>>, vector<8x32xbf16>
    %c0_1 = arith.constant 0 : index
    %c0_2 = arith.constant 0 : index
    %1 = vector.load %arg2[%c0_1, %c0_2] : memref<32x128xbf16, #tpu.memory_space<vmem>>, vector<32x128xbf16>
    %cst = arith.constant dense<0.000000e+00> : vector<8x128xf32>
    %2 = tpu.matmul %0, %1, %cst {dimension_numbers = #tpu.dot_dimension_numbers<[1], [0], [0], [1], [0, 0, 1, 1], [], []>} : vector<8x32xbf16>, vector<32x128xbf16>, vector<8x128xf32> -> vector<8x128xf32>
    %c0_3 = arith.constant 0 : index
    %c0_4 = arith.constant 0 : index
    %3 = vector.load %arg5[%c0_3, %c0_4] : memref<6x256xf32, #tpu.memory_space<vmem>>, vector<1x128xf32>
    %4 = vector.broadcast %3 : vector<1x128xf32> to vector<8x128xf32>
    %5 = arith.addf %2, %4 : vector<8x128xf32>
    %c0_5 = arith.constant 0 : index
    %c0_6 = arith.constant 0 : index
    %c0_7 = arith.constant 0 : index
    %6 = vector.load %arg3[%c0_5, %c0_6, %c0_7] : memref<2x128x384xbf16, #tpu.memory_space<vmem>>, vector<1x128x256xbf16>
    %7 = vector.shape_cast %6 : vector<1x128x256xbf16> to vector<128x256xbf16>
    %c0_8 = arith.constant 0 : index
    %c0_9 = arith.constant 0 : index
    %c256 = arith.constant 256 : index
    %8 = vector.load %arg3[%c0_8, %c0_9, %c256] : memref<2x128x384xbf16, #tpu.memory_space<vmem>>, vector<1x128x128xbf16>
    %9 = vector.shape_cast %8 : vector<1x128x128xbf16> to vector<128x128xbf16>
    %c1 = arith.constant 1 : index
    %c0_10 = arith.constant 0 : index
    %10 = vector.load %arg5[%c1, %c0_10] : memref<6x256xf32, #tpu.memory_space<vmem>>, vector<1x256xf32>
    %c2 = arith.constant 2 : index
    %c0_11 = arith.constant 0 : index
    %11 = vector.load %arg5[%c2, %c0_11] : memref<6x256xf32, #tpu.memory_space<vmem>>, vector<1x128xf32>
    %12 = arith.truncf %5 : vector<8x128xf32> to vector<8x128xbf16>
    %cst_12 = arith.constant dense<0.000000e+00> : vector<8x256xf32>
    %13 = tpu.matmul %12, %7, %cst_12 {dimension_numbers = #tpu.dot_dimension_numbers<[1], [0], [0], [1], [0, 0, 1, 1], [], []>} : vector<8x128xbf16>, vector<128x256xbf16>, vector<8x256xf32> -> vector<8x256xf32>
    %14 = vector.broadcast %10 : vector<1x256xf32> to vector<8x256xf32>
    %15 = arith.addf %13, %14 : vector<8x256xf32>
    %16 = vector.extract_strided_slice %15 {offsets = [0, 0], sizes = [8, 128], strides = [1, 1]} : vector<8x256xf32> to vector<8x128xf32>
    %17 = vector.extract_strided_slice %15 {offsets = [0, 128], sizes = [8, 128], strides = [1, 1]} : vector<8x256xf32> to vector<8x128xf32>
    %cst_13 = arith.constant 0.000000e+00 : f32
    %18 = vector.broadcast %cst_13 : f32 to vector<8x128xf32>
    %19 = arith.maximumf %17, %18 : vector<8x128xf32>
    %20 = arith.truncf %19 : vector<8x128xf32> to vector<8x128xbf16>
    %cst_14 = arith.constant dense<0.000000e+00> : vector<8x128xf32>
    %21 = tpu.matmul %20, %9, %cst_14 {dimension_numbers = #tpu.dot_dimension_numbers<[1], [0], [0], [1], [0, 0, 1, 1], [], []>} : vector<8x128xbf16>, vector<128x128xbf16>, vector<8x128xf32> -> vector<8x128xf32>
    %22 = vector.broadcast %11 : vector<1x128xf32> to vector<8x128xf32>
    %23 = arith.addf %21, %22 : vector<8x128xf32>
    %cst_15 = arith.constant 0.000000e+00 : f32
    %24 = vector.broadcast %cst_15 : f32 to vector<8x128xf32>
    %25 = arith.maximumf %23, %24 : vector<8x128xf32>
    %26 = arith.addf %25, %16 : vector<8x128xf32>
    %cst_16 = arith.constant 0.000000e+00 : f32
    %27 = vector.broadcast %cst_16 : f32 to vector<8x128xf32>
    %28 = arith.maximumf %26, %27 : vector<8x128xf32>
    %c1_17 = arith.constant 1 : index
    %c0_18 = arith.constant 0 : index
    %c0_19 = arith.constant 0 : index
    %29 = vector.load %arg3[%c1_17, %c0_18, %c0_19] : memref<2x128x384xbf16, #tpu.memory_space<vmem>>, vector<1x128x256xbf16>
    %30 = vector.shape_cast %29 : vector<1x128x256xbf16> to vector<128x256xbf16>
    %c1_20 = arith.constant 1 : index
    %c0_21 = arith.constant 0 : index
    %c256_22 = arith.constant 256 : index
    %31 = vector.load %arg3[%c1_20, %c0_21, %c256_22] : memref<2x128x384xbf16, #tpu.memory_space<vmem>>, vector<1x128x128xbf16>
    %32 = vector.shape_cast %31 : vector<1x128x128xbf16> to vector<128x128xbf16>
    %c3 = arith.constant 3 : index
    %c0_23 = arith.constant 0 : index
    %33 = vector.load %arg5[%c3, %c0_23] : memref<6x256xf32, #tpu.memory_space<vmem>>, vector<1x256xf32>
    %c4 = arith.constant 4 : index
    %c0_24 = arith.constant 0 : index
    %34 = vector.load %arg5[%c4, %c0_24] : memref<6x256xf32, #tpu.memory_space<vmem>>, vector<1x128xf32>
    %35 = arith.truncf %28 : vector<8x128xf32> to vector<8x128xbf16>
    %cst_25 = arith.constant dense<0.000000e+00> : vector<8x256xf32>
    %36 = tpu.matmul %35, %30, %cst_25 {dimension_numbers = #tpu.dot_dimension_numbers<[1], [0], [0], [1], [0, 0, 1, 1], [], []>} : vector<8x128xbf16>, vector<128x256xbf16>, vector<8x256xf32> -> vector<8x256xf32>
    %37 = vector.broadcast %33 : vector<1x256xf32> to vector<8x256xf32>
    %38 = arith.addf %36, %37 : vector<8x256xf32>
    %39 = vector.extract_strided_slice %38 {offsets = [0, 0], sizes = [8, 128], strides = [1, 1]} : vector<8x256xf32> to vector<8x128xf32>
    %40 = vector.extract_strided_slice %38 {offsets = [0, 128], sizes = [8, 128], strides = [1, 1]} : vector<8x256xf32> to vector<8x128xf32>
    %cst_26 = arith.constant 0.000000e+00 : f32
    %41 = vector.broadcast %cst_26 : f32 to vector<8x128xf32>
    %42 = arith.maximumf %40, %41 : vector<8x128xf32>
    %43 = arith.truncf %42 : vector<8x128xf32> to vector<8x128xbf16>
    %cst_27 = arith.constant dense<0.000000e+00> : vector<8x128xf32>
    %44 = tpu.matmul %43, %32, %cst_27 {dimension_numbers = #tpu.dot_dimension_numbers<[1], [0], [0], [1], [0, 0, 1, 1], [], []>} : vector<8x128xbf16>, vector<128x128xbf16>, vector<8x128xf32> -> vector<8x128xf32>
    %45 = vector.broadcast %34 : vector<1x128xf32> to vector<8x128xf32>
    %46 = arith.addf %44, %45 : vector<8x128xf32>
    %cst_28 = arith.constant 0.000000e+00 : f32
    %47 = vector.broadcast %cst_28 : f32 to vector<8x128xf32>
    %48 = arith.maximumf %46, %47 : vector<8x128xf32>
    %49 = arith.addf %48, %39 : vector<8x128xf32>
    %cst_29 = arith.constant 0.000000e+00 : f32
    %50 = vector.broadcast %cst_29 : f32 to vector<8x128xf32>
    %51 = arith.maximumf %49, %50 : vector<8x128xf32>
    %52 = arith.truncf %51 : vector<8x128xf32> to vector<8x128xbf16>
    %c0_30 = arith.constant 0 : index
    %c0_31 = arith.constant 0 : index
    %53 = vector.load %arg4[%c0_30, %c0_31] : memref<128x128xbf16, #tpu.memory_space<vmem>>, vector<128x128xbf16>
    %cst_32 = arith.constant dense<0.000000e+00> : vector<8x128xf32>
    %54 = tpu.matmul %52, %53, %cst_32 {dimension_numbers = #tpu.dot_dimension_numbers<[1], [0], [0], [1], [0, 0, 1, 1], [], []>} : vector<8x128xbf16>, vector<128x128xbf16>, vector<8x128xf32> -> vector<8x128xf32>
    %c5 = arith.constant 5 : index
    %c0_33 = arith.constant 0 : index
    %55 = vector.load %arg5[%c5, %c0_33] : memref<6x256xf32, #tpu.memory_space<vmem>>, vector<1x128xf32>
    %56 = vector.broadcast %55 : vector<1x128xf32> to vector<8x128xf32>
    %57 = arith.addf %54, %56 : vector<8x128xf32>
    %c0_34 = arith.constant 0 : index
    %c0_35 = arith.constant 0 : index
    %58 = vector.load %arg6[%c0_34, %c0_35] : memref<8x128xf32, #tpu.memory_space<vmem>>, vector<8x128xf32>
    tpu.vector_store %arg6[%c0_34, %c0_35], %57 {strides = array<i32>} : memref<8x128xf32, #tpu.memory_space<vmem>>, vector<8x128xf32>,
    return
  }
  func.func @transform_0(%arg0: i32) -> (i32, i32) {
    %c0_i32 = arith.constant 0 : i32
    %c0_i32_0 = arith.constant 0 : i32
    return %arg0, %c0_i32 : i32, i32
  }
  func.func @transform_1(%arg0: i32) -> (i32, i32) {
    %c0_i32 = arith.constant 0 : i32
    %c0_i32_0 = arith.constant 0 : i32
    %c0_i32_1 = arith.constant 0 : i32
    return %c0_i32, %c0_i32_0 : i32, i32
  }
  func.func @transform_2(%arg0: i32) -> (i32, i32, i32) {
    %c0_i32 = arith.constant 0 : i32
    %c0_i32_0 = arith.constant 0 : i32
    %c0_i32_1 = arith.constant 0 : i32
    %c0_i32_2 = arith.constant 0 : i32
    return %c0_i32, %c0_i32_0, %c0_i32_1 : i32, i32, i32
  }
  func.func @transform_3(%arg0: i32) -> (i32, i32) {
    %c0_i32 = arith.constant 0 : i32
    %c0_i32_0 = arith.constant 0 : i32
    %c0_i32_1 = arith.constant 0 : i32
    return %c0_i32, %c0_i32_0 : i32, i32
  }
  func.func @transform_4(%arg0: i32) -> (i32, i32) {
    %c0_i32 = arith.constant 0 : i32
    %c0_i32_0 = arith.constant 0 : i32
    %c0_i32_1 = arith.constant 0 : i32
    return %c0_i32, %c0_i32_0 : i32, i32
  }
  func.func @transform_5(%arg0: i32) -> (i32, i32) {
    %c0_i32 = arith.constant 0 : i32
    %c0_i32_0 = arith.constant 0 : i32
    return %arg0, %c0_i32 : i32, i32
  }
}

module attributes {stable_mosaic.version = 11 : i64} {
  func.func @_resnet_kernel(%arg0: i32, %arg1: memref<8x32xbf16, #tpu.memory_space<vmem>>, %arg2: memref<32x128xbf16, #tpu.memory_space<vmem>>, %arg3: memref<2x128x384xbf16, #tpu.memory_space<vmem>>, %arg4: memref<128x128xbf16, #tpu.memory_space<vmem>>, %arg5: memref<6x256xf32, #tpu.memory_space<vmem>>, %arg6: memref<8x128xf32, #tpu.memory_space<vmem>>) attributes {dimension_semantics = [#tpu.dimension_semantics<parallel>], iteration_bounds = array<i64: 1>, scalar_prefetch = 0 : i64, scratch_operands = 0 : i64, tpu.core_type = #tpu.core_type<tc>, window_params = [{transform_indices = @transform_0, window_bounds = array<i64: 8, 32>}, {pipeline_mode = #tpu.pipeline_mode<synchronous>, transform_indices = @transform_1, window_bounds = array<i64: 32, 128>}, {pipeline_mode = #tpu.pipeline_mode<synchronous>, transform_indices = @transform_2, window_bounds = array<i64: 2, 128, 384>}, {pipeline_mode = #tpu.pipeline_mode<synchronous>, transform_indices = @transform_3, window_bounds = array<i64: 128, 128>}, {pipeline_mode = #tpu.pipeline_mode<synchronous>, transform_indices = @transform_4, window_bounds = array<i64: 6, 256>}, {transform_indices = @transform_5, window_bounds = array<i64: 8, 128>}]} {
    %c0 = arith.constant 0 : index
    %c0_0 = arith.constant 0 : index
    %0 = vector.load %arg1[%c0, %c0_0] : memref<8x32xbf16, #tpu.memory_space<vmem>>, vector<8x32xbf16>
    %c0_1 = arith.constant 0 : index
    %c0_2 = arith.constant 0 : index
    %1 = vector.load %arg2[%c0_1, %c0_2] : memref<32x128xbf16, #tpu.memory_space<vmem>>, vector<32x128xbf16>
    %cst = arith.constant dense<0.000000e+00> : vector<8x128xf32>
    %2 = tpu.matmul %0, %1, %cst {dimension_numbers = #tpu.dot_dimension_numbers<[1], [0], [0], [1], [0, 0, 1, 1], [], []>} : vector<8x32xbf16>, vector<32x128xbf16>, vector<8x128xf32> -> vector<8x128xf32>
    %c0_3 = arith.constant 0 : index
    %c0_4 = arith.constant 0 : index
    %3 = vector.load %arg5[%c0_3, %c0_4] : memref<6x256xf32, #tpu.memory_space<vmem>>, vector<1x128xf32>
    %4 = vector.broadcast %3 : vector<1x128xf32> to vector<8x128xf32>
    %5 = arith.addf %2, %4 : vector<8x128xf32>
    %c0_5 = arith.constant 0 : index
    %c0_6 = arith.constant 0 : index
    %c0_7 = arith.constant 0 : index
    %6 = vector.load %arg3[%c0_5, %c0_6, %c0_7] : memref<2x128x384xbf16, #tpu.memory_space<vmem>>, vector<1x128x256xbf16>
    %7 = vector.shape_cast %6 : vector<1x128x256xbf16> to vector<128x256xbf16>
    %c0_8 = arith.constant 0 : index
    %c0_9 = arith.constant 0 : index
    %c256 = arith.constant 256 : index
    %8 = vector.load %arg3[%c0_8, %c0_9, %c256] : memref<2x128x384xbf16, #tpu.memory_space<vmem>>, vector<1x128x128xbf16>
    %9 = vector.shape_cast %8 : vector<1x128x128xbf16> to vector<128x128xbf16>
    %c1 = arith.constant 1 : index
    %c0_10 = arith.constant 0 : index
    %10 = vector.load %arg5[%c1, %c0_10] : memref<6x256xf32, #tpu.memory_space<vmem>>, vector<1x256xf32>
    %c2 = arith.constant 2 : index
    %c0_11 = arith.constant 0 : index
    %11 = vector.load %arg5[%c2, %c0_11] : memref<6x256xf32, #tpu.memory_space<vmem>>, vector<1x128xf32>
    %12 = arith.truncf %5 : vector<8x128xf32> to vector<8x128xbf16>
    %cst_12 = arith.constant dense<0.000000e+00> : vector<8x256xf32>
    %13 = tpu.matmul %12, %7, %cst_12 {dimension_numbers = #tpu.dot_dimension_numbers<[1], [0], [0], [1], [0, 0, 1, 1], [], []>} : vector<8x128xbf16>, vector<128x256xbf16>, vector<8x256xf32> -> vector<8x256xf32>
    %14 = vector.broadcast %10 : vector<1x256xf32> to vector<8x256xf32>
    %15 = arith.addf %13, %14 : vector<8x256xf32>
    %16 = vector.extract_strided_slice %15 {offsets = [0, 0], sizes = [8, 128], strides = [1, 1]} : vector<8x256xf32> to vector<8x128xf32>
    %17 = vector.extract_strided_slice %15 {offsets = [0, 128], sizes = [8, 128], strides = [1, 1]} : vector<8x256xf32> to vector<8x128xf32>
    %cst_13 = arith.constant 0.000000e+00 : f32
    %18 = vector.broadcast %cst_13 : f32 to vector<8x128xf32>
    %19 = arith.maximumf %17, %18 : vector<8x128xf32>
    %20 = arith.truncf %19 : vector<8x128xf32> to vector<8x128xbf16>
    %cst_14 = arith.constant dense<0.000000e+00> : vector<8x128xf32>
    %21 = tpu.matmul %20, %9, %cst_14 {dimension_numbers = #tpu.dot_dimension_numbers<[1], [0], [0], [1], [0, 0, 1, 1], [], []>} : vector<8x128xbf16>, vector<128x128xbf16>, vector<8x128xf32> -> vector<8x128xf32>
    %22 = vector.broadcast %11 : vector<1x128xf32> to vector<8x128xf32>
    %23 = arith.addf %21, %22 : vector<8x128xf32>
    %cst_15 = arith.constant 0.000000e+00 : f32
    %24 = vector.broadcast %cst_15 : f32 to vector<8x128xf32>
    %25 = arith.maximumf %23, %24 : vector<8x128xf32>
    %26 = arith.addf %25, %16 : vector<8x128xf32>
    %cst_16 = arith.constant 0.000000e+00 : f32
    %27 = vector.broadcast %cst_16 : f32 to vector<8x128xf32>
    %28 = arith.maximumf %26, %27 : vector<8x128xf32>
    %c1_17 = arith.constant 1 : index
    %c0_18 = arith.constant 0 : index
    %c0_19 = arith.constant 0 : index
    %29 = vector.load %arg3[%c1_17, %c0_18, %c0_19] : memref<2x128x384xbf16, #tpu.memory_space<vmem>>, vector<1x128x256xbf16>
    %30 = vector.shape_cast %29 : vector<1x128x256xbf16> to vector<128x256xbf16>
    %c1_20 = arith.constant 1 : index
    %c0_21 = arith.constant 0 : index
    %c256_22 = arith.constant 256 : index
    %31 = vector.load %arg3[%c1_20, %c0_21, %c256_22] : memref<2x128x384xbf16, #tpu.memory_space<vmem>>, vector<1x128x128xbf16>
    %32 = vector.shape_cast %31 : vector<1x128x128xbf16> to vector<128x128xbf16>
    %c3 = arith.constant 3 : index
    %c0_23 = arith.constant 0 : index
    %33 = vector.load %arg5[%c3, %c0_23] : memref<6x256xf32, #tpu.memory_space<vmem>>, vector<1x256xf32>
    %c4 = arith.constant 4 : index
    %c0_24 = arith.constant 0 : index
    %34 = vector.load %arg5[%c4, %c0_24] : memref<6x256xf32, #tpu.memory_space<vmem>>, vector<1x128xf32>
    %35 = arith.truncf %28 : vector<8x128xf32> to vector<8x128xbf16>
    %cst_25 = arith.constant dense<0.000000e+00> : vector<8x256xf32>
    %36 = tpu.matmul %35, %30, %cst_25 {dimension_numbers = #tpu.dot_dimension_numbers<[1], [0], [0], [1], [0, 0, 1, 1], [], []>} : vector<8x128xbf16>, vector<128x256xbf16>, vector<8x256xf32> -> vector<8x256xf32>
    %37 = vector.broadcast %33 : vector<1x256xf32> to vector<8x256xf32>
    %38 = arith.addf %36, %37 : vector<8x256xf32>
    %39 = vector.extract_strided_slice %38 {offsets = [0, 0], sizes = [8, 128], strides = [1, 1]} : vector<8x256xf32> to vector<8x128xf32>
    %40 = vector.extract_strided_slice %38 {offsets = [0, 128], sizes = [8, 128], strides = [1, 1]} : vector<8x256xf32> to vector<8x128xf32>
    %cst_26 = arith.constant 0.000000e+00 : f32
    %41 = vector.broadcast %cst_26 : f32 to vector<8x128xf32>
    %42 = arith.maximumf %40, %41 : vector<8x128xf32>
    %43 = arith.truncf %42 : vector<8x128xf32> to vector<8x128xbf16>
    %cst_27 = arith.constant dense<0.000000e+00> : vector<8x128xf32>
    %44 = tpu.matmul %43, %32, %cst_27 {dimension_numbers = #tpu.dot_dimension_numbers<[1], [0], [0], [1], [0, 0, 1, 1], [], []>} : vector<8x128xbf16>, vector<128x128xbf16>, vector<8x128xf32> -> vector<8x128xf32>
    %45 = vector.broadcast %34 : vector<1x128xf32> to vector<8x128xf32>
    %46 = arith.addf %44, %45 : vector<8x128xf32>
    %cst_28 = arith.constant 0.000000e+00 : f32
    %47 = vector.broadcast %cst_28 : f32 to vector<8x128xf32>
    %48 = arith.maximumf %46, %47 : vector<8x128xf32>
    %49 = arith.addf %48, %39 : vector<8x128xf32>
    %cst_29 = arith.constant 0.000000e+00 : f32
    %50 = vector.broadcast %cst_29 : f32 to vector<8x128xf32>
    %51 = arith.maximumf %49, %50 : vector<8x128xf32>
    %52 = arith.truncf %51 : vector<8x128xf32> to vector<8x128xbf16>
    %c0_30 = arith.constant 0 : index
    %c0_31 = arith.constant 0 : index
    %53 = vector.load %arg4[%c0_30, %c0_31] : memref<128x128xbf16, #tpu.memory_space<vmem>>, vector<128x128xbf16>
    %cst_32 = arith.constant dense<0.000000e+00> : vector<8x128xf32>
    %54 = tpu.matmul %52, %53, %cst_32 {dimension_numbers = #tpu.dot_dimension_numbers<[1], [0], [0], [1], [0, 0, 1, 1], [], []>} : vector<8x128xbf16>, vector<128x128xbf16>, vector<8x128xf32> -> vector<8x128xf32>
    %c5 = arith.constant 5 : index
    %c0_33 = arith.constant 0 : index
    %55 = vector.load %arg5[%c5, %c0_33] : memref<6x256xf32, #tpu.memory_space<vmem>>, vector<1x128xf32>
    %56 = vector.broadcast %55 : vector<1x128xf32> to vector<8x128xf32>
    %57 = arith.addf %54, %56 : vector<8x128xf32>
    %c0_34 = arith.constant 0 : index
    %c0_35 = arith.constant 0 : index
    %58 = vector.load %arg6[%c0_34, %c0_35] : memref<8x128xf32, #tpu.memory_space<vmem>>, vector<8x128xf32>
    tpu.vector_store %arg6[%c0_34, %c0_35], %57 {strides = array<i32>} : memref<8x128xf32, #tpu.memory_space<vmem>>, vector<8x128xf32>,
    return
  }
  func.func @transform_0(%arg0: i32) -> (i32, i32) {
    %c0_i32 = arith.constant 0 : i32
    %c0_i32_0 = arith.constant 0 : i32
    return %arg0, %c0_i32 : i32, i32
  }
  func.func @transform_1(%arg0: i32) -> (i32, i32) {
    %c0_i32 = arith.constant 0 : i32
    %c0_i32_0 = arith.constant 0 : i32
    %c0_i32_1 = arith.constant 0 : i32
    return %c0_i32, %c0_i32_0 : i32, i32
  }
  func.func @transform_2(%arg0: i32) -> (i32, i32, i32) {
    %c0_i32 = arith.constant 0 : i32
    %c0_i32_0 = arith.constant 0 : i32
    %c0_i32_1 = arith.constant 0 : i32
    %c0_i32_2 = arith.constant 0 : i32
    return %c0_i32, %c0_i32_0, %c0_i32_1 : i32, i32, i32
  }
  func.func @transform_3(%arg0: i32) -> (i32, i32) {
    %c0_i32 = arith.constant 0 : i32
    %c0_i32_0 = arith.constant 0 : i32
    %c0_i32_1 = arith.constant 0 : i32
    return %c0_i32, %c0_i32_0 : i32, i32
  }
  func.func @transform_4(%arg0: i32) -> (i32, i32) {
    %c0_i32 = arith.constant 0 : i32
    %c0_i32_0 = arith.constant 0 : i32
    %c0_i32_1 = arith.constant 0 : i32
    return %c0_i32, %c0_i32_0 : i32, i32
  }
  func.func @transform_5(%arg0: i32) -> (i32, i32) {
    %c0_i32 = arith.constant 0 : i32
    %c0_i32_0 = arith.constant 0 : i32
    return %arg0, %c0_i32 : i32, i32
  }
}

</mosaic_0001>

<llo_original>
// kernel: tpu_custom_call.1
$region0: #{tpu_custom_call.1}
  #allocation0 [shape = 'u32[]', space=smem, size = 0x4, offset = 0x4, fixed_abs, tag = 'smem constant byte address 0x4 - core index']
  #allocation1 [shape = 'u32[72,128]{1,0:T(1,128)}', space=vmem, size = 0x9000, scoped, tag = 'internal scratch']
  %s0 = inlined_call_operand.hbm [shape: bf16[8,32], index: 0, kind: input, shape index: {}]
  %s1 = inlined_call_operand.hbm [shape: bf16[32,128], index: 1, kind: input, shape index: {}]
  %s2 = inlined_call_operand.hbm [shape: bf16[2,128,384], index: 2, kind: input, shape index: {}]
  %s3 = inlined_call_operand.hbm [shape: bf16[128,128], index: 3, kind: input, shape index: {}]
  %s4 = inlined_call_operand.hbm [shape: f32[6,256], index: 4, kind: input, shape index: {}]
  %s5 = inlined_call_operand.hbm [shape: f32[8,128], index: 5, kind: output, shape index: {}]
  %s6 = sld [smem:[#allocation0]]
  $region50: #{tpu_custom_call.1} parent=0
    _
  %s8 = ssub.s32 1, %s6
  %s9 = scalar_select 0, %s8, %s6
  $region1: #{tpu_custom_call.1} parent=0
    #allocation2 [shape = 'u8[2048]{0}', space=vmem, size = 0x800, scoped, tag = 'input window, operand 0, single buffered']
    #allocation3 [shape = 's32[1]{0}', space=sflag, size = 0x4, scoped, tag = 'scoped memory for tpu_custom_call.1']
    #allocation4 [shape = 's32[1]{0}', space=sflag, size = 0x4, scoped, tag = 'scoped memory for tpu_custom_call.1']
    #allocation5 [shape = 'u8[8192]{0}', space=vmem, size = 0x2000, scoped, tag = 'input window, operand 1, single buffered']
    #allocation6 [shape = 's32[1]{0}', space=sflag, size = 0x4, scoped, tag = 'scoped memory for tpu_custom_call.1']
    #allocation7 [shape = 'u8[196608]{0}', space=vmem, size = 0x30000, scoped, tag = 'input window, operand 2, single buffered']
    #allocation8 [shape = 'u8[32768]{0}', space=vmem, size = 0x8000, scoped, tag = 'input window, operand 3, single buffered']
    #allocation9 [shape = 's32[1]{0}', space=sflag, size = 0x4, scoped, tag = 'scoped memory for tpu_custom_call.1']
    #allocation10 [shape = 'u8[8192]{0}', space=vmem, size = 0x2000, scoped, tag = 'input window, operand 4, single buffered']
    #allocation11 [shape = 'u8[4096]{0}', space=vmem, size = 0x1000, scoped, tag = 'output window, operand 0, single buffered']
    %10 = vsyncpa [#allocation3], 0
    %11 = vsyncpa [#allocation6], 0
    %12 = vsyncpa [#allocation9], 0
    %13 = vsyncpa [#allocation4], 0
    // Predicated region
    $region2: #{tpu_custom_call.1} parent=1 // pred_check
      _
    $region3: #{tpu_custom_call.1} parent=1 // pred_check_branch
      %15 = sbr.rel (0) target = $region5
    $region4: #{tpu_custom_call.1} parent=1 // pred_region
      %17 = vsyncadd [#allocation3], 0
      %s19 = sshll.u32 %s0, 4
      %s20 = int_to_ptr.hbm [resolvable:$true] %s19
      %s21 = sshll.u32 [#allocation2], 4
      %s22 = int_to_ptr.vmem [resolvable:$true] %s21
      %24 = dma.hbm_to_vmem [thread:$0]  %s20, 64, %s22, [#allocation3]
    $region5: #{tpu_custom_call.1} parent=1 // pred_fallthru
      _
    // Predicated region
    $region6: #{tpu_custom_call.1} parent=1 // pred_check
      _
    $region7: #{tpu_custom_call.1} parent=1 // pred_check_branch
      %26 = sbr.rel (0) target = $region9
    $region8: #{tpu_custom_call.1} parent=1 // pred_region
      %28 = vsyncadd [#allocation6], 0
      %s29 = sshll.u32 %s1, 4
      %s30 = int_to_ptr.hbm [resolvable:$true] %s29
      %s31 = sshll.u32 [#allocation5], 4
      %s32 = int_to_ptr.vmem [resolvable:$true] %s31
      %37 = dma.hbm_to_vmem [thread:$0]  %s30, 256, %s32, [#allocation6], 64, 64, 4
    $region9: #{tpu_custom_call.1} parent=1 // pred_fallthru
      _
    // Predicated region
    $region10: #{tpu_custom_call.1} parent=1 // pred_check
      _
    $region11: #{tpu_custom_call.1} parent=1 // pred_check_branch
      %39 = sbr.rel (0) target = $region13
    $region12: #{tpu_custom_call.1} parent=1 // pred_region
      %41 = vsyncadd [#allocation6], 0
      %s42 = sshll.u32 %s2, 4
      %s43 = int_to_ptr.hbm [resolvable:$true] %s42
      %s44 = sshll.u32 [#allocation7], 4
      %s45 = int_to_ptr.vmem [resolvable:$true] %s44
      %50 = dma.hbm_to_vmem [thread:$0]  %s43, 6144, %s45, [#allocation6], 192, 192, 12
    $region13: #{tpu_custom_call.1} parent=1 // pred_fallthru
      _
    // Predicated region
    $region14: #{tpu_custom_call.1} parent=1 // pred_check
      _
    $region15: #{tpu_custom_call.1} parent=1 // pred_check_branch
      %52 = sbr.rel (0) target = $region17
    $region16: #{tpu_custom_call.1} parent=1 // pred_region
      %54 = vsyncadd [#allocation9], 0
      %s55 = sshll.u32 %s3, 4
      %s56 = int_to_ptr.hbm [resolvable:$true] %s55
      %s57 = sshll.u32 [#allocation8], 4
      %s58 = int_to_ptr.vmem [resolvable:$true] %s57
      %63 = dma.hbm_to_vmem [thread:$0]  %s56, 1024, %s58, [#allocation9], 64, 64, 4
    $region17: #{tpu_custom_call.1} parent=1 // pred_fallthru
      _
    // Predicated region
    $region18: #{tpu_custom_call.1} parent=1 // pred_check
      _
    $region19: #{tpu_custom_call.1} parent=1 // pred_check_branch
      %65 = sbr.rel (0) target = $region21
    $region20: #{tpu_custom_call.1} parent=1 // pred_region
      %67 = vsyncadd [#allocation9], 0
      %s69 = sshll.u32 %s4, 4
      %s70 = int_to_ptr.hbm [resolvable:$true] %s69
      %s71 = sshll.u32 [#allocation10], 4
      %s72 = int_to_ptr.vmem [resolvable:$true] %s71
      %74 = dma.hbm_to_vmem [thread:$0]  %s70, 256, %s72, [#allocation9]
    $region21: #{tpu_custom_call.1} parent=1 // pred_fallthru
      _
    // Predicated region
    $region22: #{tpu_custom_call.1} parent=1 // pred_check
      _
    $region23: #{tpu_custom_call.1} parent=1 // pred_check_branch
      %76 = sbr.rel (0) target = $region25
    $region24: #{tpu_custom_call.1} parent=1 // pred_region
      %78 = dma.done [#allocation3], 64
    $region25: #{tpu_custom_call.1} parent=1 // pred_fallthru
      _
    // Predicated region
    $region26: #{tpu_custom_call.1} parent=1 // pred_check
      _
    $region27: #{tpu_custom_call.1} parent=1 // pred_check_branch
      %80 = sbr.rel (0) target = $region29
    $region28: #{tpu_custom_call.1} parent=1 // pred_region
      %82 = dma.done [#allocation6], 256
    $region29: #{tpu_custom_call.1} parent=1 // pred_fallthru
      _
    // Predicated region
    $region30: #{tpu_custom_call.1} parent=1 // pred_check
      _
    $region31: #{tpu_custom_call.1} parent=1 // pred_check_branch
      %84 = sbr.rel (0) target = $region33
    $region32: #{tpu_custom_call.1} parent=1 // pred_region
      %86 = dma.done [#allocation6], 6144
    $region33: #{tpu_custom_call.1} parent=1 // pred_fallthru
      _
    // Predicated region
    $region34: #{tpu_custom_call.1} parent=1 // pred_check
      _
    $region35: #{tpu_custom_call.1} parent=1 // pred_check_branch
      %88 = sbr.rel (0) target = $region37
    $region36: #{tpu_custom_call.1} parent=1 // pred_region
      %90 = dma.done [#allocation9], 1024
    $region37: #{tpu_custom_call.1} parent=1 // pred_fallthru
      _
    // Predicated region
    $region38: #{tpu_custom_call.1} parent=1 // pred_check
      _
    $region39: #{tpu_custom_call.1} parent=1 // pred_check_branch
      %92 = sbr.rel (0) target = $region41
    $region40: #{tpu_custom_call.1} parent=1 // pred_region
      %94 = dma.done [#allocation9], 256
    $region41: #{tpu_custom_call.1} parent=1 // pred_fallthru
      _
    %v96 = vld [vmem:[#allocation2] sm:$0xf]
    %v97 = vld [vmem:[#allocation5] sm:$0xf]
    %v98 = vld [vmem:[#allocation5 + $0x4] sm:$0xf]
    %v99 = vld [vmem:[#allocation5 + $0x8] sm:$0xf]
    %v100 = vld [vmem:[#allocation5 + $0xc] sm:$0xf]
    %v101 = vld [vmem:[#allocation10] ss:$0 sm:$0xff]
    %v106 = vunpack.c.l.b16 %v97
    %v107 = vunpack.c.l.b16 %v98
    %v108 = vunpack.c.l.b16 %v99
    %v109 = vunpack.c.l.b16 %v100
    %v110 = vpack.c.b16 %v107, %v106
    %v111 = vpack.c.b16 %v109, %v108
    %vm114 = vcmask 261120
    %v116 = vsel %vm114, %v96, 0
    %118 = vmatpush.bf16.msra.mxu0 0
    %119 = vmatpush.bf16.msra.mxu0 0
    %120 = vmatpush.bf16.msra.mxu0 0
    %121 = vmatpush.bf16.msra.mxu0 0
    %122 = vmatpush.bf16.msra.mxu0 0
    %123 = vmatpush.bf16.msra.mxu0 0
    %124 = vmatpush.bf16.msra.mxu0 %v111
    %125 = vmatpush.bf16.msra.mxu0 %v110
    %126 = vmatmul.bf16.gmra.mxu0 %v116
    %v127 = vpop.f32.mrf.mxu0
    %v128 = vadd.f32 %v101, %v127
    %v129 = vpop.f32.mrf.mxu0
    %130 = vdwg.mxu0
    %v131 = vld [vmem:[#allocation7] sm:$0xff]
    %v132 = vld [vmem:[#allocation7 + $0xc] sm:$0xff]
    %v133 = vld [vmem:[#allocation7 + $0x18] sm:$0xff]
    %v134 = vld [vmem:[#allocation7 + $0x24] sm:$0xff]
    %v135 = vld [vmem:[#allocation7 + $0x30] sm:$0xff]
    %v136 = vld [vmem:[#allocation7 + $0x3c] sm:$0xff]
    %v137 = vld [vmem:[#allocation7 + $0x48] sm:$0xff]
    %v138 = vld [vmem:[#allocation7 + $0x54] sm:$0xff]
    %v139 = vld [vmem:[#allocation7 + $0x60] sm:$0xff]
    %v140 = vld [vmem:[#allocation7 + $0x6c] sm:$0xff]
    %v141 = vld [vmem:[#allocation7 + $0x78] sm:$0xff]
    %v142 = vld [vmem:[#allocation7 + $0x84] sm:$0xff]
    %v143 = vld [vmem:[#allocation7 + $0x90] sm:$0xff]
    %v144 = vld [vmem:[#allocation7 + $0x9c] sm:$0xff]
    %v145 = vld [vmem:[#allocation7 + $0xa8] sm:$0xff]
    %v146 = vld [vmem:[#allocation7 + $0xb4] sm:$0xff]
    %v147 = vld [vmem:[#allocation7 + $0x8] sm:$0xf]
    %v148 = vld [vmem:[#allocation7 + $0x14] sm:$0xf]
    %v149 = vld [vmem:[#allocation7 + $0x20] sm:$0xf]
    %v150 = vld [vmem:[#allocation7 + $0x2c] sm:$0xf]
    %v151 = vld [vmem:[#allocation7 + $0x38] sm:$0xf]
    %v152 = vld [vmem:[#allocation7 + $0x44] sm:$0xf]
    %v153 = vld [vmem:[#allocation7 + $0x50] sm:$0xf]
    %v154 = vld [vmem:[#allocation7 + $0x5c] sm:$0xf]
    %v155 = vld [vmem:[#allocation7 + $0x68] sm:$0xf]
    %v156 = vld [vmem:[#allocation7 + $0x74] sm:$0xf]
    %v157 = vld [vmem:[#allocation7 + $0x80] sm:$0xf]
    %v158 = vld [vmem:[#allocation7 + $0x8c] sm:$0xf]
    %v159 = vld [vmem:[#allocation7 + $0x98] sm:$0xf]
    %v160 = vld [vmem:[#allocation7 + $0xa4] sm:$0xf]
    %v161 = vld [vmem:[#allocation7 + $0xb0] sm:$0xf]
    %v162 = vld [vmem:[#allocation7 + $0xbc] sm:$0xf]
    %s163 = scalar_lea.vmem [#allocation10], 1
    %v164 = vld [vmem:[%s163] ss:$8 sm:$0x3]
    %v165 = vld [vmem:[#allocation10 + $0x2] ss:$0 sm:$0xff]
    %v166 = vpack.c.bf16 %v128, %v128
    %v168 = vperm.slane %v164, 0
    %v169 = vperm.slane %v164, 1
    %v188 = vunpack.c.l.b16 %v131
    %v189 = vunpack.c.h.b16 %v131
    %v190 = vunpack.c.l.b16 %v132
    %v191 = vunpack.c.h.b16 %v132
    %v192 = vunpack.c.l.b16 %v133
    %v193 = vunpack.c.h.b16 %v133
    %v194 = vunpack.c.l.b16 %v134
    %v195 = vunpack.c.h.b16 %v134
    %v196 = vunpack.c.l.b16 %v135
    %v197 = vunpack.c.h.b16 %v135
    %v198 = vunpack.c.l.b16 %v136
    %v199 = vunpack.c.h.b16 %v136
    %v200 = vunpack.c.l.b16 %v137
    %v201 = vunpack.c.h.b16 %v137
    %v202 = vunpack.c.l.b16 %v138
    %v203 = vunpack.c.h.b16 %v138
    %v204 = vunpack.c.l.b16 %v139
    %v205 = vunpack.c.h.b16 %v139
    %v206 = vunpack.c.l.b16 %v140
    %v207 = vunpack.c.h.b16 %v140
    %v208 = vunpack.c.l.b16 %v141
    %v209 = vunpack.c.h.b16 %v141
    %v210 = vunpack.c.l.b16 %v142
    %v211 = vunpack.c.h.b16 %v142
    %v212 = vunpack.c.l.b16 %v143
    %v213 = vunpack.c.h.b16 %v143
    %v214 = vunpack.c.l.b16 %v144
    %v215 = vunpack.c.h.b16 %v144
    %v216 = vunpack.c.l.b16 %v145
    %v217 = vunpack.c.h.b16 %v145
    %v218 = vunpack.c.l.b16 %v146
    %v219 = vunpack.c.h.b16 %v146
    %v220 = vpack.c.b16 %v190, %v188
    %v221 = vpack.c.b16 %v191, %v189
    %v222 = vpack.c.b16 %v194, %v192
    %v223 = vpack.c.b16 %v195, %v193
    %v224 = vpack.c.b16 %v198, %v196
    %v225 = vpack.c.b16 %v199, %v197
    %v226 = vpack.c.b16 %v202, %v200
    %v227 = vpack.c.b16 %v203, %v201
    %v228 = vpack.c.b16 %v206, %v204
    %v229 = vpack.c.b16 %v207, %v205
    %v230 = vpack.c.b16 %v210, %v208
    %v231 = vpack.c.b16 %v211, %v209
    %v232 = vpack.c.b16 %v214, %v212
    %v233 = vpack.c.b16 %v215, %v213
    %v234 = vpack.c.b16 %v218, %v216
    %v235 = vpack.c.b16 %v219, %v217
    %252 = vmatpush.bf16.msra.mxu0 %v234
    %253 = vmatpush.bf16.msra.mxu0 %v232
    %254 = vmatpush.bf16.msra.mxu0 %v230
    %255 = vmatpush.bf16.msra.mxu0 %v228
    %256 = vmatpush.bf16.msra.mxu0 %v226
    %257 = vmatpush.bf16.msra.mxu0 %v224
    %258 = vmatpush.bf16.msra.mxu0 %v222
    %259 = vmatpush.bf16.msra.mxu0 %v220
    %260 = vmatmul.bf16.gmra.mxu0 %v166
    %v261 = vpop.f32.mrf.mxu0
    %v262 = vadd.f32 %v168, %v261
    %v263 = vpop.f32.mrf.mxu0
    %264 = vdwg.mxu0
    %265 = vmatpush.bf16.msra.mxu0 %v235
    %266 = vmatpush.bf16.msra.mxu0 %v233
    %267 = vmatpush.bf16.msra.mxu0 %v231
    %268 = vmatpush.bf16.msra.mxu0 %v229
    %269 = vmatpush.bf16.msra.mxu0 %v227
    %270 = vmatpush.bf16.msra.mxu0 %v225
    %271 = vmatpush.bf16.msra.mxu0 %v223
    %272 = vmatpush.bf16.msra.mxu0 %v221
    %273 = vmatmul.bf16.gmra.mxu0 %v166
    %v274 = vpop.f32.mrf.mxu0
    %v275 = vadd.f32 %v169, %v274
    %v276 = vpop.f32.mrf.mxu0
    %277 = vdwg.mxu0
    %v278 = vmax.f32 %v275, 0.0
    %v279 = vpack.c.bf16 %v278, %v278
    %v296 = vunpack.c.l.b16 %v147
    %v297 = vunpack.c.l.b16 %v148
    %v298 = vunpack.c.l.b16 %v149
    %v299 = vunpack.c.l.b16 %v150
    %v300 = vunpack.c.l.b16 %v151
    %v301 = vunpack.c.l.b16 %v152
    %v302 = vunpack.c.l.b16 %v153
    %v303 = vunpack.c.l.b16 %v154
    %v304 = vunpack.c.l.b16 %v155
    %v305 = vunpack.c.l.b16 %v156
    %v306 = vunpack.c.l.b16 %v157
    %v307 = vunpack.c.l.b16 %v158
    %v308 = vunpack.c.l.b16 %v159
    %v309 = vunpack.c.l.b16 %v160
    %v310 = vunpack.c.l.b16 %v161
    %v311 = vunpack.c.l.b16 %v162
    %v312 = vpack.c.b16 %v297, %v296
    %v313 = vpack.c.b16 %v299, %v298
    %v314 = vpack.c.b16 %v301, %v300
    %v315 = vpack.c.b16 %v303, %v302
    %v316 = vpack.c.b16 %v305, %v304
    %v317 = vpack.c.b16 %v307, %v306
    %v318 = vpack.c.b16 %v309, %v308
    %v319 = vpack.c.b16 %v311, %v310
    %328 = vmatpush.bf16.msra.mxu0 %v319
    %329 = vmatpush.bf16.msra.mxu0 %v318
    %330 = vmatpush.bf16.msra.mxu0 %v317
    %331 = vmatpush.bf16.msra.mxu0 %v316
    %332 = vmatpush.bf16.msra.mxu0 %v315
    %333 = vmatpush.bf16.msra.mxu0 %v314
    %334 = vmatpush.bf16.msra.mxu0 %v313
    %335 = vmatpush.bf16.msra.mxu0 %v312
    %336 = vmatmul.bf16.gmra.mxu0 %v279
    %v337 = vpop.f32.mrf.mxu0
    %v338 = vadd.f32 %v165, %v337
    %v339 = vpop.f32.mrf.mxu0
    %340 = vdwg.mxu0
    %v341 = vmax.f32 %v338, 0.0
    %v342 = vadd.f32 %v341, %v262
    %v343 = vmax.f32 %v342, 0.0
    %s344 = scalar_lea.vmem [#allocation7], 192
    %v345 = vld [vmem:[%s344] sm:$0xff]
    %v346 = vld [vmem:[%s344 + $0xc] sm:$0xff]
    %v347 = vld [vmem:[%s344 + $0x18] sm:$0xff]
    %v348 = vld [vmem:[%s344 + $0x24] sm:$0xff]
    %v349 = vld [vmem:[%s344 + $0x30] sm:$0xff]
    %v350 = vld [vmem:[%s344 + $0x3c] sm:$0xff]
    %v351 = vld [vmem:[%s344 + $0x48] sm:$0xff]
    %v352 = vld [vmem:[%s344 + $0x54] sm:$0xff]
    %v353 = vld [vmem:[%s344 + $0x60] sm:$0xff]
    %v354 = vld [vmem:[%s344 + $0x6c] sm:$0xff]
    %v355 = vld [vmem:[%s344 + $0x78] sm:$0xff]
    %v356 = vld [vmem:[%s344 + $0x84] sm:$0xff]
    %v357 = vld [vmem:[%s344 + $0x90] sm:$0xff]
    %v358 = vld [vmem:[%s344 + $0x9c] sm:$0xff]
    %v359 = vld [vmem:[%s344 + $0xa8] sm:$0xff]
    %v360 = vld [vmem:[%s344 + $0xb4] sm:$0xff]
    %v361 = vld [vmem:[%s344 + $0x8] sm:$0xf]
    %v362 = vld [vmem:[%s344 + $0x14] sm:$0xf]
    %v363 = vld [vmem:[%s344 + $0x20] sm:$0xf]
    %v364 = vld [vmem:[%s344 + $0x2c] sm:$0xf]
    %v365 = vld [vmem:[%s344 + $0x38] sm:$0xf]
    %v366 = vld [vmem:[%s344 + $0x44] sm:$0xf]
    %v367 = vld [vmem:[%s344 + $0x50] sm:$0xf]
    %v368 = vld [vmem:[%s344 + $0x5c] sm:$0xf]
    %v369 = vld [vmem:[%s344 + $0x68] sm:$0xf]
    %v370 = vld [vmem:[%s344 + $0x74] sm:$0xf]
    %v371 = vld [vmem:[%s344 + $0x80] sm:$0xf]
    %v372 = vld [vmem:[%s344 + $0x8c] sm:$0xf]
    %v373 = vld [vmem:[%s344 + $0x98] sm:$0xf]
    %v374 = vld [vmem:[%s344 + $0xa4] sm:$0xf]
    %v375 = vld [vmem:[%s344 + $0xb0] sm:$0xf]
    %v376 = vld [vmem:[%s344 + $0xbc] sm:$0xf]
    %s377 = scalar_lea.vmem [#allocation10], 3
    %v378 = vld [vmem:[%s377] ss:$8 sm:$0x3]
    %v379 = vld [vmem:[#allocation10 + $0x4] ss:$0 sm:$0xff]
    %v380 = vpack.c.bf16 %v343, %v343
    %v382 = vperm.slane %v378, 0
    %v383 = vperm.slane %v378, 1
    %v402 = vunpack.c.l.b16 %v345
    %v403 = vunpack.c.h.b16 %v345
    %v404 = vunpack.c.l.b16 %v346
    %v405 = vunpack.c.h.b16 %v346
    %v406 = vunpack.c.l.b16 %v347
    %v407 = vunpack.c.h.b16 %v347
    %v408 = vunpack.c.l.b16 %v348
    %v409 = vunpack.c.h.b16 %v348
    %v410 = vunpack.c.l.b16 %v349
    %v411 = vunpack.c.h.b16 %v349
    %v412 = vunpack.c.l.b16 %v350
    %v413 = vunpack.c.h.b16 %v350
    %v414 = vunpack.c.l.b16 %v351
    %v415 = vunpack.c.h.b16 %v351
    %v416 = vunpack.c.l.b16 %v352
    %v417 = vunpack.c.h.b16 %v352
    %v418 = vunpack.c.l.b16 %v353
    %v419 = vunpack.c.h.b16 %v353
    %v420 = vunpack.c.l.b16 %v354
    %v421 = vunpack.c.h.b16 %v354
    %v422 = vunpack.c.l.b16 %v355
    %v423 = vunpack.c.h.b16 %v355
    %v424 = vunpack.c.l.b16 %v356
    %v425 = vunpack.c.h.b16 %v356
    %v426 = vunpack.c.l.b16 %v357
    %v427 = vunpack.c.h.b16 %v357
    %v428 = vunpack.c.l.b16 %v358
    %v429 = vunpack.c.h.b16 %v358
    %v430 = vunpack.c.l.b16 %v359
    %v431 = vunpack.c.h.b16 %v359
    %v432 = vunpack.c.l.b16 %v360
    %v433 = vunpack.c.h.b16 %v360
    %v434 = vpack.c.b16 %v404, %v402
    %v435 = vpack.c.b16 %v405, %v403
    %v436 = vpack.c.b16 %v408, %v406
    %v437 = vpack.c.b16 %v409, %v407
    %v438 = vpack.c.b16 %v412, %v410
    %v439 = vpack.c.b16 %v413, %v411
    %v440 = vpack.c.b16 %v416, %v414
    %v441 = vpack.c.b16 %v417, %v415
    %v442 = vpack.c.b16 %v420, %v418
    %v443 = vpack.c.b16 %v421, %v419
    %v444 = vpack.c.b16 %v424, %v422
    %v445 = vpack.c.b16 %v425, %v423
    %v446 = vpack.c.b16 %v428, %v426
    %v447 = vpack.c.b16 %v429, %v427
    %v448 = vpack.c.b16 %v432, %v430
    %v449 = vpack.c.b16 %v433, %v431
    %466 = vmatpush.bf16.msra.mxu0 %v448
    %467 = vmatpush.bf16.msra.mxu0 %v446
    %468 = vmatpush.bf16.msra.mxu0 %v444
    %469 = vmatpush.bf16.msra.mxu0 %v442
    %470 = vmatpush.bf16.msra.mxu0 %v440
    %471 = vmatpush.bf16.msra.mxu0 %v438
    %472 = vmatpush.bf16.msra.mxu0 %v436
    %473 = vmatpush.bf16.msra.mxu0 %v434
    %474 = vmatmul.bf16.gmra.mxu0 %v380
    %v475 = vpop.f32.mrf.mxu0
    %v476 = vadd.f32 %v382, %v475
    %v477 = vpop.f32.mrf.mxu0
    %478 = vdwg.mxu0
    %479 = vmatpush.bf16.msra.mxu0 %v449
    %480 = vmatpush.bf16.msra.mxu0 %v447
    %481 = vmatpush.bf16.msra.mxu0 %v445
    %482 = vmatpush.bf16.msra.mxu0 %v443
    %483 = vmatpush.bf16.msra.mxu0 %v441
    %484 = vmatpush.bf16.msra.mxu0 %v439
    %485 = vmatpush.bf16.msra.mxu0 %v437
    %486 = vmatpush.bf16.msra.mxu0 %v435
    %487 = vmatmul.bf16.gmra.mxu0 %v380
    %v488 = vpop.f32.mrf.mxu0
    %v489 = vadd.f32 %v383, %v488
    %v490 = vpop.f32.mrf.mxu0
    %491 = vdwg.mxu0
    %v492 = vmax.f32 %v489, 0.0
    %v493 = vpack.c.bf16 %v492, %v492
    %v510 = vunpack.c.l.b16 %v361
    %v511 = vunpack.c.l.b16 %v362
    %v512 = vunpack.c.l.b16 %v363
    %v513 = vunpack.c.l.b16 %v364
    %v514 = vunpack.c.l.b16 %v365
    %v515 = vunpack.c.l.b16 %v366
    %v516 = vunpack.c.l.b16 %v367
    %v517 = vunpack.c.l.b16 %v368
    %v518 = vunpack.c.l.b16 %v369
    %v519 = vunpack.c.l.b16 %v370
    %v520 = vunpack.c.l.b16 %v371
    %v521 = vunpack.c.l.b16 %v372
    %v522 = vunpack.c.l.b16 %v373
    %v523 = vunpack.c.l.b16 %v374
    %v524 = vunpack.c.l.b16 %v375
    %v525 = vunpack.c.l.b16 %v376
    %v526 = vpack.c.b16 %v511, %v510
    %v527 = vpack.c.b16 %v513, %v512
    %v528 = vpack.c.b16 %v515, %v514
    %v529 = vpack.c.b16 %v517, %v516
    %v530 = vpack.c.b16 %v519, %v518
    %v531 = vpack.c.b16 %v521, %v520
    %v532 = vpack.c.b16 %v523, %v522
    %v533 = vpack.c.b16 %v525, %v524
    %542 = vmatpush.bf16.msra.mxu0 %v533
    %543 = vmatpush.bf16.msra.mxu0 %v532
    %544 = vmatpush.bf16.msra.mxu0 %v531
    %545 = vmatpush.bf16.msra.mxu0 %v530
    %546 = vmatpush.bf16.msra.mxu0 %v529
    %547 = vmatpush.bf16.msra.mxu0 %v528
    %548 = vmatpush.bf16.msra.mxu0 %v527
    %549 = vmatpush.bf16.msra.mxu0 %v526
    %550 = vmatmul.bf16.gmra.mxu0 %v493
    %v551 = vpop.f32.mrf.mxu0
    %v552 = vadd.f32 %v379, %v551
    %v553 = vpop.f32.mrf.mxu0
    %554 = vdwg.mxu0
    %v555 = vmax.f32 %v552, 0.0
    %v556 = vadd.f32 %v555, %v476
    %v557 = vmax.f32 %v556, 0.0
    %v558 = vpack.c.bf16 %v557, %v557
    %v559 = vld [vmem:[#allocation8] sm:$0xf]
    %v560 = vld [vmem:[#allocation8 + $0x4] sm:$0xf]
    %v561 = vld [vmem:[#allocation8 + $0x8] sm:$0xf]
    %v562 = vld [vmem:[#allocation8 + $0xc] sm:$0xf]
    %v563 = vld [vmem:[#allocation8 + $0x10] sm:$0xf]
    %v564 = vld [vmem:[#allocation8 + $0x14] sm:$0xf]
    %v565 = vld [vmem:[#allocation8 + $0x18] sm:$0xf]
    %v566 = vld [vmem:[#allocation8 + $0x1c] sm:$0xf]
    %v567 = vld [vmem:[#allocation8 + $0x20] sm:$0xf]
    %v568 = vld [vmem:[#allocation8 + $0x24] sm:$0xf]
    %v569 = vld [vmem:[#allocation8 + $0x28] sm:$0xf]
    %v570 = vld [vmem:[#allocation8 + $0x2c] sm:$0xf]
    %v571 = vld [vmem:[#allocation8 + $0x30] sm:$0xf]
    %v572 = vld [vmem:[#allocation8 + $0x34] sm:$0xf]
    %v573 = vld [vmem:[#allocation8 + $0x38] sm:$0xf]
    %v574 = vld [vmem:[#allocation8 + $0x3c] sm:$0xf]
    %v575 = vld [vmem:[#allocation10 + $0x5] ss:$0 sm:$0xff]
    %v592 = vunpack.c.l.b16 %v559
    %v593 = vunpack.c.l.b16 %v560
    %v594 = vunpack.c.l.b16 %v561
    %v595 = vunpack.c.l.b16 %v562
    %v596 = vunpack.c.l.b16 %v563
    %v597 = vunpack.c.l.b16 %v564
    %v598 = vunpack.c.l.b16 %v565
    %v599 = vunpack.c.l.b16 %v566
    %v600 = vunpack.c.l.b16 %v567
    %v601 = vunpack.c.l.b16 %v568
    %v602 = vunpack.c.l.b16 %v569
    %v603 = vunpack.c.l.b16 %v570
    %v604 = vunpack.c.l.b16 %v571
    %v605 = vunpack.c.l.b16 %v572
    %v606 = vunpack.c.l.b16 %v573
    %v607 = vunpack.c.l.b16 %v574
    %v608 = vpack.c.b16 %v593, %v592
    %v609 = vpack.c.b16 %v595, %v594
    %v610 = vpack.c.b16 %v597, %v596
    %v611 = vpack.c.b16 %v599, %v598
    %v612 = vpack.c.b16 %v601, %v600
    %v613 = vpack.c.b16 %v603, %v602
    %v614 = vpack.c.b16 %v605, %v604
    %v615 = vpack.c.b16 %v607, %v606
    %624 = vmatpush.bf16.msra.mxu0 %v615
    %625 = vmatpush.bf16.msra.mxu0 %v614
    %626 = vmatpush.bf16.msra.mxu0 %v613
    %627 = vmatpush.bf16.msra.mxu0 %v612
    %628 = vmatpush.bf16.msra.mxu0 %v611
    %629 = vmatpush.bf16.msra.mxu0 %v610
    %630 = vmatpush.bf16.msra.mxu0 %v609
    %631 = vmatpush.bf16.msra.mxu0 %v608
    %632 = vmatmul.bf16.gmra.mxu0 %v558
    %v633 = vpop.f32.mrf.mxu0
    %v634 = vadd.f32 %v575, %v633
    %v635 = vpop.f32.mrf.mxu0
    %636 = vdwg.mxu0
    %637 = vst [vmem:[#allocation11] sm:$0xff] %v634
    // Predicated region
    $region42: #{tpu_custom_call.1} parent=1 // pred_check
      _
    $region43: #{tpu_custom_call.1} parent=1 // pred_check_branch
      %639 = sbr.rel (0) target = $region45
    $region44: #{tpu_custom_call.1} parent=1 // pred_region
      %641 = vsyncadd [#allocation4], 0
      %s643 = sshll.u32 [#allocation11], 4
      %s644 = int_to_ptr.vmem [resolvable:$true] %s643
      %s645 = sshll.u32 %s5, 4
      %s646 = int_to_ptr.hbm [resolvable:$true] %s645
      %648 = dma.vmem_to_hbm [thread:$0]  %s644, 128, %s646, [#allocation4]
    $region45: #{tpu_custom_call.1} parent=1 // pred_fallthru
      _
    // Predicated region
    $region46: #{tpu_custom_call.1} parent=1 // pred_check
      _
    $region47: #{tpu_custom_call.1} parent=1 // pred_check_branch
      %650 = sbr.rel (0) target = $region49
    $region48: #{tpu_custom_call.1} parent=1 // pred_region
      %652 = dma.done [#allocation4], 128
    $region49: #{tpu_custom_call.1} parent=1 // pred_fallthru
      _
    %653 = vsyncpa [#allocation3], 1
    %654 = vsyncpa [#allocation6], 1
    %655 = vsyncpa [#allocation9], 1
    %656 = vsyncpa [#allocation4], 1

// kernel: tpu_custom_call.1
$region0: #{tpu_custom_call.1}
  #allocation0 [shape = 'u32[]', space=smem, size = 0x4, offset = 0x4, fixed_abs, tag = 'smem constant byte address 0x4 - core index']
  #allocation1 [shape = 'u32[72,128]{1,0:T(1,128)}', space=vmem, size = 0x9000, scoped, tag = 'internal scratch']
  %s0 = inlined_call_operand.hbm [shape: bf16[8,32], index: 0, kind: input, shape index: {}]
  %s1 = inlined_call_operand.hbm [shape: bf16[32,128], index: 1, kind: input, shape index: {}]
  %s2 = inlined_call_operand.hbm [shape: bf16[2,128,384], index: 2, kind: input, shape index: {}]
  %s3 = inlined_call_operand.hbm [shape: bf16[128,128], index: 3, kind: input, shape index: {}]
  %s4 = inlined_call_operand.hbm [shape: f32[6,256], index: 4, kind: input, shape index: {}]
  %s5 = inlined_call_operand.hbm [shape: f32[8,128], index: 5, kind: output, shape index: {}]
  %s6 = sld [smem:[#allocation0]]
  $region50: #{tpu_custom_call.1} parent=0
    _
  %s8 = ssub.s32 1, %s6
  %s9 = scalar_select 0, %s8, %s6
  $region1: #{tpu_custom_call.1} parent=0
    #allocation2 [shape = 'u8[2048]{0}', space=vmem, size = 0x800, scoped, tag = 'input window, operand 0, single buffered']
    #allocation3 [shape = 's32[1]{0}', space=sflag, size = 0x4, scoped, tag = 'scoped memory for tpu_custom_call.1']
    #allocation4 [shape = 's32[1]{0}', space=sflag, size = 0x4, scoped, tag = 'scoped memory for tpu_custom_call.1']
    #allocation5 [shape = 'u8[8192]{0}', space=vmem, size = 0x2000, scoped, tag = 'input window, operand 1, single buffered']
    #allocation6 [shape = 's32[1]{0}', space=sflag, size = 0x4, scoped, tag = 'scoped memory for tpu_custom_call.1']
    #allocation7 [shape = 'u8[196608]{0}', space=vmem, size = 0x30000, scoped, tag = 'input window, operand 2, single buffered']
    #allocation8 [shape = 'u8[32768]{0}', space=vmem, size = 0x8000, scoped, tag = 'input window, operand 3, single buffered']
    #allocation9 [shape = 's32[1]{0}', space=sflag, size = 0x4, scoped, tag = 'scoped memory for tpu_custom_call.1']
    #allocation10 [shape = 'u8[8192]{0}', space=vmem, size = 0x2000, scoped, tag = 'input window, operand 4, single buffered']
    #allocation11 [shape = 'u8[4096]{0}', space=vmem, size = 0x1000, scoped, tag = 'output window, operand 0, single buffered']
    %10 = vsyncpa [#allocation3], 0
    %11 = vsyncpa [#allocation6], 0
    %12 = vsyncpa [#allocation9], 0
    %13 = vsyncpa [#allocation4], 0
    // Predicated region
    $region2: #{tpu_custom_call.1} parent=1 // pred_check
      _
    $region3: #{tpu_custom_call.1} parent=1 // pred_check_branch
      %15 = sbr.rel (0) target = $region5
    $region4: #{tpu_custom_call.1} parent=1 // pred_region
      %17 = vsyncadd [#allocation3], 0
      %s19 = sshll.u32 %s0, 4
      %s20 = int_to_ptr.hbm [resolvable:$true] %s19
      %s21 = sshll.u32 [#allocation2], 4
      %s22 = int_to_ptr.vmem [resolvable:$true] %s21
      %24 = dma.hbm_to_vmem [thread:$0]  %s20, 64, %s22, [#allocation3]
    $region5: #{tpu_custom_call.1} parent=1 // pred_fallthru
      _
    // Predicated region
    $region6: #{tpu_custom_call.1} parent=1 // pred_check
      _
    $region7: #{tpu_custom_call.1} parent=1 // pred_check_branch
      %26 = sbr.rel (0) target = $region9
    $region8: #{tpu_custom_call.1} parent=1 // pred_region
      %28 = vsyncadd [#allocation6], 0
      %s29 = sshll.u32 %s1, 4
      %s30 = int_to_ptr.hbm [resolvable:$true] %s29
      %s31 = sshll.u32 [#allocation5], 4
      %s32 = int_to_ptr.vmem [resolvable:$true] %s31
      %37 = dma.hbm_to_vmem [thread:$0]  %s30, 256, %s32, [#allocation6], 64, 64, 4
    $region9: #{tpu_custom_call.1} parent=1 // pred_fallthru
      _
    // Predicated region
    $region10: #{tpu_custom_call.1} parent=1 // pred_check
      _
    $region11: #{tpu_custom_call.1} parent=1 // pred_check_branch
      %39 = sbr.rel (0) target = $region13
    $region12: #{tpu_custom_call.1} parent=1 // pred_region
      %41 = vsyncadd [#allocation6], 0
      %s42 = sshll.u32 %s2, 4
      %s43 = int_to_ptr.hbm [resolvable:$true] %s42
      %s44 = sshll.u32 [#allocation7], 4
      %s45 = int_to_ptr.vmem [resolvable:$true] %s44
      %50 = dma.hbm_to_vmem [thread:$0]  %s43, 6144, %s45, [#allocation6], 192, 192, 12
    $region13: #{tpu_custom_call.1} parent=1 // pred_fallthru
      _
    // Predicated region
    $region14: #{tpu_custom_call.1} parent=1 // pred_check
      _
    $region15: #{tpu_custom_call.1} parent=1 // pred_check_branch
      %52 = sbr.rel (0) target = $region17
    $region16: #{tpu_custom_call.1} parent=1 // pred_region
      %54 = vsyncadd [#allocation9], 0
      %s55 = sshll.u32 %s3, 4
      %s56 = int_to_ptr.hbm [resolvable:$true] %s55
      %s57 = sshll.u32 [#allocation8], 4
      %s58 = int_to_ptr.vmem [resolvable:$true] %s57
      %63 = dma.hbm_to_vmem [thread:$0]  %s56, 1024, %s58, [#allocation9], 64, 64, 4
    $region17: #{tpu_custom_call.1} parent=1 // pred_fallthru
      _
    // Predicated region
    $region18: #{tpu_custom_call.1} parent=1 // pred_check
      _
    $region19: #{tpu_custom_call.1} parent=1 // pred_check_branch
      %65 = sbr.rel (0) target = $region21
    $region20: #{tpu_custom_call.1} parent=1 // pred_region
      %67 = vsyncadd [#allocation9], 0
      %s69 = sshll.u32 %s4, 4
      %s70 = int_to_ptr.hbm [resolvable:$true] %s69
      %s71 = sshll.u32 [#allocation10], 4
      %s72 = int_to_ptr.vmem [resolvable:$true] %s71
      %74 = dma.hbm_to_vmem [thread:$0]  %s70, 256, %s72, [#allocation9]
    $region21: #{tpu_custom_call.1} parent=1 // pred_fallthru
      _
    // Predicated region
    $region22: #{tpu_custom_call.1} parent=1 // pred_check
      _
    $region23: #{tpu_custom_call.1} parent=1 // pred_check_branch
      %76 = sbr.rel (0) target = $region25
    $region24: #{tpu_custom_call.1} parent=1 // pred_region
      %78 = dma.done [#allocation3], 64
    $region25: #{tpu_custom_call.1} parent=1 // pred_fallthru
      _
    // Predicated region
    $region26: #{tpu_custom_call.1} parent=1 // pred_check
      _
    $region27: #{tpu_custom_call.1} parent=1 // pred_check_branch
      %80 = sbr.rel (0) target = $region29
    $region28: #{tpu_custom_call.1} parent=1 // pred_region
      %82 = dma.done [#allocation6], 256
    $region29: #{tpu_custom_call.1} parent=1 // pred_fallthru
      _
    // Predicated region
    $region30: #{tpu_custom_call.1} parent=1 // pred_check
      _
    $region31: #{tpu_custom_call.1} parent=1 // pred_check_branch
      %84 = sbr.rel (0) target = $region33
    $region32: #{tpu_custom_call.1} parent=1 // pred_region
      %86 = dma.done [#allocation6], 6144
    $region33: #{tpu_custom_call.1} parent=1 // pred_fallthru
      _
    // Predicated region
    $region34: #{tpu_custom_call.1} parent=1 // pred_check
      _
    $region35: #{tpu_custom_call.1} parent=1 // pred_check_branch
      %88 = sbr.rel (0) target = $region37
    $region36: #{tpu_custom_call.1} parent=1 // pred_region
      %90 = dma.done [#allocation9], 1024
    $region37: #{tpu_custom_call.1} parent=1 // pred_fallthru
      _
    // Predicated region
    $region38: #{tpu_custom_call.1} parent=1 // pred_check
      _
    $region39: #{tpu_custom_call.1} parent=1 // pred_check_branch
      %92 = sbr.rel (0) target = $region41
    $region40: #{tpu_custom_call.1} parent=1 // pred_region
      %94 = dma.done [#allocation9], 256
    $region41: #{tpu_custom_call.1} parent=1 // pred_fallthru
      _
    %v96 = vld [vmem:[#allocation2] sm:$0xf]
    %v97 = vld [vmem:[#allocation5] sm:$0xf]
    %v98 = vld [vmem:[#allocation5 + $0x4] sm:$0xf]
    %v99 = vld [vmem:[#allocation5 + $0x8] sm:$0xf]
    %v100 = vld [vmem:[#allocation5 + $0xc] sm:$0xf]
    %v101 = vld [vmem:[#allocation10] ss:$0 sm:$0xff]
    %v106 = vunpack.c.l.b16 %v97
    %v107 = vunpack.c.l.b16 %v98
    %v108 = vunpack.c.l.b16 %v99
    %v109 = vunpack.c.l.b16 %v100
    %v110 = vpack.c.b16 %v107, %v106
    %v111 = vpack.c.b16 %v109, %v108
    %vm114 = vcmask 261120
    %v116 = vsel %vm114, %v96, 0
    %118 = vmatpush.bf16.msra.mxu0 0
    %119 = vmatpush.bf16.msra.mxu0 0
    %120 = vmatpush.bf16.msra.mxu0 0
    %121 = vmatpush.bf16.msra.mxu0 0
    %122 = vmatpush.bf16.msra.mxu0 0
    %123 = vmatpush.bf16.msra.mxu0 0
    %124 = vmatpush.bf16.msra.mxu0 %v111
    %125 = vmatpush.bf16.msra.mxu0 %v110
    %126 = vmatmul.bf16.gmra.mxu0 %v116
    %v127 = vpop.f32.mrf.mxu0
    %v128 = vadd.f32 %v101, %v127
    %v129 = vpop.f32.mrf.mxu0
    %130 = vdwg.mxu0
    %v131 = vld [vmem:[#allocation7] sm:$0xff]
    %v132 = vld [vmem:[#allocation7 + $0xc] sm:$0xff]
    %v133 = vld [vmem:[#allocation7 + $0x18] sm:$0xff]
    %v134 = vld [vmem:[#allocation7 + $0x24] sm:$0xff]
    %v135 = vld [vmem:[#allocation7 + $0x30] sm:$0xff]
    %v136 = vld [vmem:[#allocation7 + $0x3c] sm:$0xff]
    %v137 = vld [vmem:[#allocation7 + $0x48] sm:$0xff]
    %v138 = vld [vmem:[#allocation7 + $0x54] sm:$0xff]
    %v139 = vld [vmem:[#allocation7 + $0x60] sm:$0xff]
    %v140 = vld [vmem:[#allocation7 + $0x6c] sm:$0xff]
    %v141 = vld [vmem:[#allocation7 + $0x78] sm:$0xff]
    %v142 = vld [vmem:[#allocation7 + $0x84] sm:$0xff]
    %v143 = vld [vmem:[#allocation7 + $0x90] sm:$0xff]
    %v144 = vld [vmem:[#allocation7 + $0x9c] sm:$0xff]
    %v145 = vld [vmem:[#allocation7 + $0xa8] sm:$0xff]
    %v146 = vld [vmem:[#allocation7 + $0xb4] sm:$0xff]
    %v147 = vld [vmem:[#allocation7 + $0x8] sm:$0xf]
    %v148 = vld [vmem:[#allocation7 + $0x14] sm:$0xf]
    %v149 = vld [vmem:[#allocation7 + $0x20] sm:$0xf]
    %v150 = vld [vmem:[#allocation7 + $0x2c] sm:$0xf]
    %v151 = vld [vmem:[#allocation7 + $0x38] sm:$0xf]
    %v152 = vld [vmem:[#allocation7 + $0x44] sm:$0xf]
    %v153 = vld [vmem:[#allocation7 + $0x50] sm:$0xf]
    %v154 = vld [vmem:[#allocation7 + $0x5c] sm:$0xf]
    %v155 = vld [vmem:[#allocation7 + $0x68] sm:$0xf]
    %v156 = vld [vmem:[#allocation7 + $0x74] sm:$0xf]
    %v157 = vld [vmem:[#allocation7 + $0x80] sm:$0xf]
    %v158 = vld [vmem:[#allocation7 + $0x8c] sm:$0xf]
    %v159 = vld [vmem:[#allocation7 + $0x98] sm:$0xf]
    %v160 = vld [vmem:[#allocation7 + $0xa4] sm:$0xf]
    %v161 = vld [vmem:[#allocation7 + $0xb0] sm:$0xf]
    %v162 = vld [vmem:[#allocation7 + $0xbc] sm:$0xf]
    %s163 = scalar_lea.vmem [#allocation10], 1
    %v164 = vld [vmem:[%s163] ss:$8 sm:$0x3]
    %v165 = vld [vmem:[#allocation10 + $0x2] ss:$0 sm:$0xff]
    %v166 = vpack.c.bf16 %v128, %v128
    %v168 = vperm.slane %v164, 0
    %v169 = vperm.slane %v164, 1
    %v188 = vunpack.c.l.b16 %v131
    %v189 = vunpack.c.h.b16 %v131
    %v190 = vunpack.c.l.b16 %v132
    %v191 = vunpack.c.h.b16 %v132
    %v192 = vunpack.c.l.b16 %v133
    %v193 = vunpack.c.h.b16 %v133
    %v194 = vunpack.c.l.b16 %v134
    %v195 = vunpack.c.h.b16 %v134
    %v196 = vunpack.c.l.b16 %v135
    %v197 = vunpack.c.h.b16 %v135
    %v198 = vunpack.c.l.b16 %v136
    %v199 = vunpack.c.h.b16 %v136
    %v200 = vunpack.c.l.b16 %v137
    %v201 = vunpack.c.h.b16 %v137
    %v202 = vunpack.c.l.b16 %v138
    %v203 = vunpack.c.h.b16 %v138
    %v204 = vunpack.c.l.b16 %v139
    %v205 = vunpack.c.h.b16 %v139
    %v206 = vunpack.c.l.b16 %v140
    %v207 = vunpack.c.h.b16 %v140
    %v208 = vunpack.c.l.b16 %v141
    %v209 = vunpack.c.h.b16 %v141
    %v210 = vunpack.c.l.b16 %v142
    %v211 = vunpack.c.h.b16 %v142
    %v212 = vunpack.c.l.b16 %v143
    %v213 = vunpack.c.h.b16 %v143
    %v214 = vunpack.c.l.b16 %v144
    %v215 = vunpack.c.h.b16 %v144
    %v216 = vunpack.c.l.b16 %v145
    %v217 = vunpack.c.h.b16 %v145
    %v218 = vunpack.c.l.b16 %v146
    %v219 = vunpack.c.h.b16 %v146
    %v220 = vpack.c.b16 %v190, %v188
    %v221 = vpack.c.b16 %v191, %v189
    %v222 = vpack.c.b16 %v194, %v192
    %v223 = vpack.c.b16 %v195, %v193
    %v224 = vpack.c.b16 %v198, %v196
    %v225 = vpack.c.b16 %v199, %v197
    %v226 = vpack.c.b16 %v202, %v200
    %v227 = vpack.c.b16 %v203, %v201
    %v228 = vpack.c.b16 %v206, %v204
    %v229 = vpack.c.b16 %v207, %v205
    %v230 = vpack.c.b16 %v210, %v208
    %v231 = vpack.c.b16 %v211, %v209
    %v232 = vpack.c.b16 %v214, %v212
    %v233 = vpack.c.b16 %v215, %v213
    %v234 = vpack.c.b16 %v218, %v216
    %v235 = vpack.c.b16 %v219, %v217
    %252 = vmatpush.bf16.msra.mxu0 %v234
    %253 = vmatpush.bf16.msra.mxu0 %v232
    %254 = vmatpush.bf16.msra.mxu0 %v230
    %255 = vmatpush.bf16.msra.mxu0 %v228
    %256 = vmatpush.bf16.msra.mxu0 %v226
    %257 = vmatpush.bf16.msra.mxu0 %v224
    %258 = vmatpush.bf16.msra.mxu0 %v222
    %259 = vmatpush.bf16.msra.mxu0 %v220
    %260 = vmatmul.bf16.gmra.mxu0 %v166
    %v261 = vpop.f32.mrf.mxu0
    %v262 = vadd.f32 %v168, %v261
    %v263 = vpop.f32.mrf.mxu0
    %264 = vdwg.mxu0
    %265 = vmatpush.bf16.msra.mxu0 %v235
    %266 = vmatpush.bf16.msra.mxu0 %v233
    %267 = vmatpush.bf16.msra.mxu0 %v231
    %268 = vmatpush.bf16.msra.mxu0 %v229
    %269 = vmatpush.bf16.msra.mxu0 %v227
    %270 = vmatpush.bf16.msra.mxu0 %v225
    %271 = vmatpush.bf16.msra.mxu0 %v223
    %272 = vmatpush.bf16.msra.mxu0 %v221
    %273 = vmatmul.bf16.gmra.mxu0 %v166
    %v274 = vpop.f32.mrf.mxu0
    %v275 = vadd.f32 %v169, %v274
    %v276 = vpop.f32.mrf.mxu0
    %277 = vdwg.mxu0
    %v278 = vmax.f32 %v275, 0.0
    %v279 = vpack.c.bf16 %v278, %v278
    %v296 = vunpack.c.l.b16 %v147
    %v297 = vunpack.c.l.b16 %v148
    %v298 = vunpack.c.l.b16 %v149
    %v299 = vunpack.c.l.b16 %v150
    %v300 = vunpack.c.l.b16 %v151
    %v301 = vunpack.c.l.b16 %v152
    %v302 = vunpack.c.l.b16 %v153
    %v303 = vunpack.c.l.b16 %v154
    %v304 = vunpack.c.l.b16 %v155
    %v305 = vunpack.c.l.b16 %v156
    %v306 = vunpack.c.l.b16 %v157
    %v307 = vunpack.c.l.b16 %v158
    %v308 = vunpack.c.l.b16 %v159
    %v309 = vunpack.c.l.b16 %v160
    %v310 = vunpack.c.l.b16 %v161
    %v311 = vunpack.c.l.b16 %v162
    %v312 = vpack.c.b16 %v297, %v296
    %v313 = vpack.c.b16 %v299, %v298
    %v314 = vpack.c.b16 %v301, %v300
    %v315 = vpack.c.b16 %v303, %v302
    %v316 = vpack.c.b16 %v305, %v304
    %v317 = vpack.c.b16 %v307, %v306
    %v318 = vpack.c.b16 %v309, %v308
    %v319 = vpack.c.b16 %v311, %v310
    %328 = vmatpush.bf16.msra.mxu0 %v319
    %329 = vmatpush.bf16.msra.mxu0 %v318
    %330 = vmatpush.bf16.msra.mxu0 %v317
    %331 = vmatpush.bf16.msra.mxu0 %v316
    %332 = vmatpush.bf16.msra.mxu0 %v315
    %333 = vmatpush.bf16.msra.mxu0 %v314
    %334 = vmatpush.bf16.msra.mxu0 %v313
    %335 = vmatpush.bf16.msra.mxu0 %v312
    %336 = vmatmul.bf16.gmra.mxu0 %v279
    %v337 = vpop.f32.mrf.mxu0
    %v338 = vadd.f32 %v165, %v337
    %v339 = vpop.f32.mrf.mxu0
    %340 = vdwg.mxu0
    %v341 = vmax.f32 %v338, 0.0
    %v342 = vadd.f32 %v341, %v262
    %v343 = vmax.f32 %v342, 0.0
    %s344 = scalar_lea.vmem [#allocation7], 192
    %v345 = vld [vmem:[%s344] sm:$0xff]
    %v346 = vld [vmem:[%s344 + $0xc] sm:$0xff]
    %v347 = vld [vmem:[%s344 + $0x18] sm:$0xff]
    %v348 = vld [vmem:[%s344 + $0x24] sm:$0xff]
    %v349 = vld [vmem:[%s344 + $0x30] sm:$0xff]
    %v350 = vld [vmem:[%s344 + $0x3c] sm:$0xff]
    %v351 = vld [vmem:[%s344 + $0x48] sm:$0xff]
    %v352 = vld [vmem:[%s344 + $0x54] sm:$0xff]
    %v353 = vld [vmem:[%s344 + $0x60] sm:$0xff]
    %v354 = vld [vmem:[%s344 + $0x6c] sm:$0xff]
    %v355 = vld [vmem:[%s344 + $0x78] sm:$0xff]
    %v356 = vld [vmem:[%s344 + $0x84] sm:$0xff]
    %v357 = vld [vmem:[%s344 + $0x90] sm:$0xff]
    %v358 = vld [vmem:[%s344 + $0x9c] sm:$0xff]
    %v359 = vld [vmem:[%s344 + $0xa8] sm:$0xff]
    %v360 = vld [vmem:[%s344 + $0xb4] sm:$0xff]
    %v361 = vld [vmem:[%s344 + $0x8] sm:$0xf]
    %v362 = vld [vmem:[%s344 + $0x14] sm:$0xf]
    %v363 = vld [vmem:[%s344 + $0x20] sm:$0xf]
    %v364 = vld [vmem:[%s344 + $0x2c] sm:$0xf]
    %v365 = vld [vmem:[%s344 + $0x38] sm:$0xf]
    %v366 = vld [vmem:[%s344 + $0x44] sm:$0xf]
    %v367 = vld [vmem:[%s344 + $0x50] sm:$0xf]
    %v368 = vld [vmem:[%s344 + $0x5c] sm:$0xf]
    %v369 = vld [vmem:[%s344 + $0x68] sm:$0xf]
    %v370 = vld [vmem:[%s344 + $0x74] sm:$0xf]
    %v371 = vld [vmem:[%s344 + $0x80] sm:$0xf]
    %v372 = vld [vmem:[%s344 + $0x8c] sm:$0xf]
    %v373 = vld [vmem:[%s344 + $0x98] sm:$0xf]
    %v374 = vld [vmem:[%s344 + $0xa4] sm:$0xf]
    %v375 = vld [vmem:[%s344 + $0xb0] sm:$0xf]
    %v376 = vld [vmem:[%s344 + $0xbc] sm:$0xf]
    %s377 = scalar_lea.vmem [#allocation10], 3
    %v378 = vld [vmem:[%s377] ss:$8 sm:$0x3]
    %v379 = vld [vmem:[#allocation10 + $0x4] ss:$0 sm:$0xff]
    %v380 = vpack.c.bf16 %v343, %v343
    %v382 = vperm.slane %v378, 0
    %v383 = vperm.slane %v378, 1
    %v402 = vunpack.c.l.b16 %v345
    %v403 = vunpack.c.h.b16 %v345
    %v404 = vunpack.c.l.b16 %v346
    %v405 = vunpack.c.h.b16 %v346
    %v406 = vunpack.c.l.b16 %v347
    %v407 = vunpack.c.h.b16 %v347
    %v408 = vunpack.c.l.b16 %v348
    %v409 = vunpack.c.h.b16 %v348
    %v410 = vunpack.c.l.b16 %v349
    %v411 = vunpack.c.h.b16 %v349
    %v412 = vunpack.c.l.b16 %v350
    %v413 = vunpack.c.h.b16 %v350
    %v414 = vunpack.c.l.b16 %v351
    %v415 = vunpack.c.h.b16 %v351
    %v416 = vunpack.c.l.b16 %v352
    %v417 = vunpack.c.h.b16 %v352
    %v418 = vunpack.c.l.b16 %v353
    %v419 = vunpack.c.h.b16 %v353
    %v420 = vunpack.c.l.b16 %v354
    %v421 = vunpack.c.h.b16 %v354
    %v422 = vunpack.c.l.b16 %v355
    %v423 = vunpack.c.h.b16 %v355
    %v424 = vunpack.c.l.b16 %v356
    %v425 = vunpack.c.h.b16 %v356
    %v426 = vunpack.c.l.b16 %v357
    %v427 = vunpack.c.h.b16 %v357
    %v428 = vunpack.c.l.b16 %v358
    %v429 = vunpack.c.h.b16 %v358
    %v430 = vunpack.c.l.b16 %v359
    %v431 = vunpack.c.h.b16 %v359
    %v432 = vunpack.c.l.b16 %v360
    %v433 = vunpack.c.h.b16 %v360
    %v434 = vpack.c.b16 %v404, %v402
    %v435 = vpack.c.b16 %v405, %v403
    %v436 = vpack.c.b16 %v408, %v406
    %v437 = vpack.c.b16 %v409, %v407
    %v438 = vpack.c.b16 %v412, %v410
    %v439 = vpack.c.b16 %v413, %v411
    %v440 = vpack.c.b16 %v416, %v414
    %v441 = vpack.c.b16 %v417, %v415
    %v442 = vpack.c.b16 %v420, %v418
    %v443 = vpack.c.b16 %v421, %v419
    %v444 = vpack.c.b16 %v424, %v422
    %v445 = vpack.c.b16 %v425, %v423
    %v446 = vpack.c.b16 %v428, %v426
    %v447 = vpack.c.b16 %v429, %v427
    %v448 = vpack.c.b16 %v432, %v430
    %v449 = vpack.c.b16 %v433, %v431
    %466 = vmatpush.bf16.msra.mxu0 %v448
    %467 = vmatpush.bf16.msra.mxu0 %v446
    %468 = vmatpush.bf16.msra.mxu0 %v444
    %469 = vmatpush.bf16.msra.mxu0 %v442
    %470 = vmatpush.bf16.msra.mxu0 %v440
    %471 = vmatpush.bf16.msra.mxu0 %v438
    %472 = vmatpush.bf16.msra.mxu0 %v436
    %473 = vmatpush.bf16.msra.mxu0 %v434
    %474 = vmatmul.bf16.gmra.mxu0 %v380
    %v475 = vpop.f32.mrf.mxu0
    %v476 = vadd.f32 %v382, %v475
    %v477 = vpop.f32.mrf.mxu0
    %478 = vdwg.mxu0
    %479 = vmatpush.bf16.msra.mxu0 %v449
    %480 = vmatpush.bf16.msra.mxu0 %v447
    %481 = vmatpush.bf16.msra.mxu0 %v445
    %482 = vmatpush.bf16.msra.mxu0 %v443
    %483 = vmatpush.bf16.msra.mxu0 %v441
    %484 = vmatpush.bf16.msra.mxu0 %v439
    %485 = vmatpush.bf16.msra.mxu0 %v437
    %486 = vmatpush.bf16.msra.mxu0 %v435
    %487 = vmatmul.bf16.gmra.mxu0 %v380
    %v488 = vpop.f32.mrf.mxu0
    %v489 = vadd.f32 %v383, %v488
    %v490 = vpop.f32.mrf.mxu0
    %491 = vdwg.mxu0
    %v492 = vmax.f32 %v489, 0.0
    %v493 = vpack.c.bf16 %v492, %v492
    %v510 = vunpack.c.l.b16 %v361
    %v511 = vunpack.c.l.b16 %v362
    %v512 = vunpack.c.l.b16 %v363
    %v513 = vunpack.c.l.b16 %v364
    %v514 = vunpack.c.l.b16 %v365
    %v515 = vunpack.c.l.b16 %v366
    %v516 = vunpack.c.l.b16 %v367
    %v517 = vunpack.c.l.b16 %v368
    %v518 = vunpack.c.l.b16 %v369
    %v519 = vunpack.c.l.b16 %v370
    %v520 = vunpack.c.l.b16 %v371
    %v521 = vunpack.c.l.b16 %v372
    %v522 = vunpack.c.l.b16 %v373
    %v523 = vunpack.c.l.b16 %v374
    %v524 = vunpack.c.l.b16 %v375
    %v525 = vunpack.c.l.b16 %v376
    %v526 = vpack.c.b16 %v511, %v510
    %v527 = vpack.c.b16 %v513, %v512
    %v528 = vpack.c.b16 %v515, %v514
    %v529 = vpack.c.b16 %v517, %v516
    %v530 = vpack.c.b16 %v519, %v518
    %v531 = vpack.c.b16 %v521, %v520
    %v532 = vpack.c.b16 %v523, %v522
    %v533 = vpack.c.b16 %v525, %v524
    %542 = vmatpush.bf16.msra.mxu0 %v533
    %543 = vmatpush.bf16.msra.mxu0 %v532
    %544 = vmatpush.bf16.msra.mxu0 %v531
    %545 = vmatpush.bf16.msra.mxu0 %v530
    %546 = vmatpush.bf16.msra.mxu0 %v529
    %547 = vmatpush.bf16.msra.mxu0 %v528
    %548 = vmatpush.bf16.msra.mxu0 %v527
    %549 = vmatpush.bf16.msra.mxu0 %v526
    %550 = vmatmul.bf16.gmra.mxu0 %v493
    %v551 = vpop.f32.mrf.mxu0
    %v552 = vadd.f32 %v379, %v551
    %v553 = vpop.f32.mrf.mxu0
    %554 = vdwg.mxu0
    %v555 = vmax.f32 %v552, 0.0
    %v556 = vadd.f32 %v555, %v476
    %v557 = vmax.f32 %v556, 0.0
    %v558 = vpack.c.bf16 %v557, %v557
    %v559 = vld [vmem:[#allocation8] sm:$0xf]
    %v560 = vld [vmem:[#allocation8 + $0x4] sm:$0xf]
    %v561 = vld [vmem:[#allocation8 + $0x8] sm:$0xf]
    %v562 = vld [vmem:[#allocation8 + $0xc] sm:$0xf]
    %v563 = vld [vmem:[#allocation8 + $0x10] sm:$0xf]
    %v564 = vld [vmem:[#allocation8 + $0x14] sm:$0xf]
    %v565 = vld [vmem:[#allocation8 + $0x18] sm:$0xf]
    %v566 = vld [vmem:[#allocation8 + $0x1c] sm:$0xf]
    %v567 = vld [vmem:[#allocation8 + $0x20] sm:$0xf]
    %v568 = vld [vmem:[#allocation8 + $0x24] sm:$0xf]
    %v569 = vld [vmem:[#allocation8 + $0x28] sm:$0xf]
    %v570 = vld [vmem:[#allocation8 + $0x2c] sm:$0xf]
    %v571 = vld [vmem:[#allocation8 + $0x30] sm:$0xf]
    %v572 = vld [vmem:[#allocation8 + $0x34] sm:$0xf]
    %v573 = vld [vmem:[#allocation8 + $0x38] sm:$0xf]
    %v574 = vld [vmem:[#allocation8 + $0x3c] sm:$0xf]
    %v575 = vld [vmem:[#allocation10 + $0x5] ss:$0 sm:$0xff]
    %v592 = vunpack.c.l.b16 %v559
    %v593 = vunpack.c.l.b16 %v560
    %v594 = vunpack.c.l.b16 %v561
    %v595 = vunpack.c.l.b16 %v562
    %v596 = vunpack.c.l.b16 %v563
    %v597 = vunpack.c.l.b16 %v564
    %v598 = vunpack.c.l.b16 %v565
    %v599 = vunpack.c.l.b16 %v566
    %v600 = vunpack.c.l.b16 %v567
    %v601 = vunpack.c.l.b16 %v568
    %v602 = vunpack.c.l.b16 %v569
    %v603 = vunpack.c.l.b16 %v570
    %v604 = vunpack.c.l.b16 %v571
    %v605 = vunpack.c.l.b16 %v572
    %v606 = vunpack.c.l.b16 %v573
    %v607 = vunpack.c.l.b16 %v574
    %v608 = vpack.c.b16 %v593, %v592
    %v609 = vpack.c.b16 %v595, %v594
    %v610 = vpack.c.b16 %v597, %v596
    %v611 = vpack.c.b16 %v599, %v598
    %v612 = vpack.c.b16 %v601, %v600
    %v613 = vpack.c.b16 %v603, %v602
    %v614 = vpack.c.b16 %v605, %v604
    %v615 = vpack.c.b16 %v607, %v606
    %624 = vmatpush.bf16.msra.mxu0 %v615
    %625 = vmatpush.bf16.msra.mxu0 %v614
    %626 = vmatpush.bf16.msra.mxu0 %v613
    %627 = vmatpush.bf16.msra.mxu0 %v612
    %628 = vmatpush.bf16.msra.mxu0 %v611
    %629 = vmatpush.bf16.msra.mxu0 %v610
    %630 = vmatpush.bf16.msra.mxu0 %v609
    %631 = vmatpush.bf16.msra.mxu0 %v608
    %632 = vmatmul.bf16.gmra.mxu0 %v558
    %v633 = vpop.f32.mrf.mxu0
    %v634 = vadd.f32 %v575, %v633
    %v635 = vpop.f32.mrf.mxu0
    %636 = vdwg.mxu0
    %637 = vst [vmem:[#allocation11] sm:$0xff] %v634
    // Predicated region
    $region42: #{tpu_custom_call.1} parent=1 // pred_check
      _
    $region43: #{tpu_custom_call.1} parent=1 // pred_check_branch
      %639 = sbr.rel (0) target = $region45
    $region44: #{tpu_custom_call.1} parent=1 // pred_region
      %641 = vsyncadd [#allocation4], 0
      %s643 = sshll.u32 [#allocation11], 4
      %s644 = int_to_ptr.vmem [resolvable:$true] %s643
      %s645 = sshll.u32 %s5, 4
      %s646 = int_to_ptr.hbm [resolvable:$true] %s645
      %648 = dma.vmem_to_hbm [thread:$0]  %s644, 128, %s646, [#allocation4]
    $region45: #{tpu_custom_call.1} parent=1 // pred_fallthru
      _
    // Predicated region
    $region46: #{tpu_custom_call.1} parent=1 // pred_check
      _
    $region47: #{tpu_custom_call.1} parent=1 // pred_check_branch
      %650 = sbr.rel (0) target = $region49
    $region48: #{tpu_custom_call.1} parent=1 // pred_region
      %652 = dma.done [#allocation4], 128
    $region49: #{tpu_custom_call.1} parent=1 // pred_fallthru
      _
    %653 = vsyncpa [#allocation3], 1
    %654 = vsyncpa [#allocation6], 1
    %655 = vsyncpa [#allocation9], 1
    %656 = vsyncpa [#allocation4], 1

</llo_original>
